<compile_context>
chip_gen: v7x
topology: tpu7x:2x2x1
jax: 0.10.0
libtpu: 0.0.40
codegen_flags: <defaults>
</compile_context>

<pallas_src>
import jax
import jax.numpy as jnp
from jax.experimental import pallas as pl
from jax.experimental.pallas import tpu as pltpu

_SUBLANE = 8     # f32 sublane granularity (batch-tile quantum)
_LANE = 128      # lane width (packed-output piece alignment)


def _round_up(x, m):
    return ((x + m - 1) // m) * m


def _sigmoid(x):
    # tanh-form sigmoid: numerically stable and runs on the EUP (free bundle slot).
    return 0.5 * (jnp.tanh(0.5 * x) + 1.0)


# ----------------------------------------------------------------------------------
# Kernel
# ----------------------------------------------------------------------------------
def attention_decoder_kernel(
    # batch-tiled inputs
    h_ref,        # [BB, H]     f32  previous hidden state
    c_ref,        # [BB, H]     f32  previous cell state
    enc_ref,      # [BB, T, E]  bf16 encoder outputs (values)
    tokrow_ref,   # [BB, 4H]    f32  gathered W_ih token rows + (b_ih + b_hh)
    # parameters (full-array constant blocks)
    wq_ref,       # [H, A]      bf16
    bqk_ref,      # [1, A]      f32  (fc_query.bias + fc_values.bias)
    wv_ref,       # [E, A]      bf16
    vrow_ref,     # [1, A]      f32  (v weight row; applied on the VPU)
    wgates_ref,   # [E+H, 4H]   bf16 (concat of W_ih[:, Y:].T and W_hh.T)
    wout_ref,     # [H, Y]      bf16
    bout_ref,     # [1, Y]      f32
    # output: lane-dense packed slab [out | h_new | c_new | attn], 128-aligned pieces
    packed_ref,   # [BB, PACK]  f32
):
    BB, T, E = enc_ref.shape
    H = h_ref.shape[1]
    Y = wout_ref.shape[1]

    enc_bf = enc_ref[...]                    # [BB, T, E] bf16
    h = h_ref[...]                           # [BB, H] f32 (recurrent state kept f32)
    c_prev = c_ref[...]                      # [BB, H] f32
    h_bf = h.astype(jnp.bfloat16)

    # ---- Bahdanau attention -------------------------------------------------
    # keys: one flattened [BB*T, E] @ [E, A] MXU matmul (fills MXU rows) instead
    # of BB tiny batched matmuls.
    keys = jnp.dot(enc_bf.reshape(BB * T, E), wv_ref[...],
                   preferred_element_type=jnp.float32).reshape(BB, T, -1)  # [BB,T,A]
    # fc_values.bias is folded into bqk (same tanh argument).
    query = jnp.dot(h_bf, wq_ref[...],
                    preferred_element_type=jnp.float32) + bqk_ref[...]     # [BB, A]
    t = jnp.tanh(query[:, None, :] + keys)                                 # [BB,T,A]
    # v-projection has output width 1 -> VPU multiply + lane reduce (no N=1 MXU
    # matvec).  The v bias is constant across T, so softmax ignores it -> dropped.
    e = jnp.sum(t * vrow_ref[...], axis=-1)                                # [BB, T]
    e = e - jnp.max(e, axis=-1, keepdims=True)
    p = jnp.exp(e)
    a = p * pl.reciprocal(jnp.sum(p, axis=-1, keepdims=True), approx=True)  # [BB, T]

    # context = sum_t a[b,t] * enc[b,t,:]  (accumulated in f32)
    ctx = jnp.sum(a[:, :, None] * enc_bf.astype(jnp.float32), axis=1)      # [BB, E]

    # ---- LSTM cell ------------------------------------------------------------
    # Token contribution (one-hot @ W_ih[:, :Y].T) arrives pre-gathered in
    # tokrow_ref (with b_ih + b_hh folded in).  The ctx / h contributions are
    # fused into a single MXU push against the pre-concatenated weight.
    xh_bf = jnp.concatenate([ctx.astype(jnp.bfloat16), h_bf], axis=-1)     # [BB,E+H]
    gates = tokrow_ref[...] + jnp.dot(xh_bf, wgates_ref[...],
                                      preferred_element_type=jnp.float32)  # [BB,4H]
    # NOTE: at H a multiple of 128 these slices are lane-aligned (free); at small H
    # they are a few in-vreg lane rotates.
    i_g = _sigmoid(gates[:, 0:H])
    f_g = _sigmoid(gates[:, H:2 * H])
    g_g = jnp.tanh(gates[:, 2 * H:3 * H])
    o_g = _sigmoid(gates[:, 3 * H:4 * H])
    c_new = f_g * c_prev + i_g * g_g
    h_new = o_g * jnp.tanh(c_new)

    # ---- output projection ----------------------------------------------------
    out = jnp.dot(h_new.astype(jnp.bfloat16), wout_ref[...],
                  preferred_element_type=jnp.float32) + bout_ref[...]      # [BB, Y]

    # ---- single lane-dense store; every piece padded to a 128-lane boundary ----
    out_p = _round_up(Y, _LANE)
    h_p = _round_up(H, _LANE)
    t_p = _round_up(T, _LANE)

    def _pad_lanes(x, width):
        extra = width - x.shape[1]
        if extra == 0:
            return x
        return jnp.concatenate([x, jnp.zeros((BB, extra), jnp.float32)], axis=-1)

    packed_ref[...] = jnp.concatenate(
        [_pad_lanes(out, out_p), _pad_lanes(h_new, h_p),
         _pad_lanes(c_new, h_p), _pad_lanes(a, t_p)], axis=-1)


# ----------------------------------------------------------------------------------
# Parameter preparation (hoisted out of the per-step forward)
# ----------------------------------------------------------------------------------
def init_params(key, hidden_dim, attention_dim, y_dim, encoder_output_dim):
    """Deterministic PyTorch-shaped parameters: Linear weight [out, in], bias [out]."""
    ks = jax.random.split(key, 12)
    s = 0.1
    H, A, Y, E = hidden_dim, attention_dim, y_dim, encoder_output_dim
    return {
        'wq':  s * jax.random.normal(ks[0], (A, H), jnp.float32),
        'bq':  s * jax.random.normal(ks[1], (A,), jnp.float32),
        'wv':  s * jax.random.normal(ks[2], (A, E), jnp.float32),
        'bv':  s * jax.random.normal(ks[3], (A,), jnp.float32),
        'vw':  s * jax.random.normal(ks[4], (1, A), jnp.float32),
        'vb':  s * jax.random.normal(ks[5], (1,), jnp.float32),
        'wih': s * jax.random.normal(ks[6], (4 * H, Y + E), jnp.float32),
        'bih': s * jax.random.normal(ks[7], (4 * H,), jnp.float32),
        'whh': s * jax.random.normal(ks[8], (4 * H, H), jnp.float32),
        'bhh': s * jax.random.normal(ks[9], (4 * H,), jnp.float32),
        'wout': s * jax.random.normal(ks[10], (Y, H), jnp.float32),
        'bout': s * jax.random.normal(ks[11], (Y,), jnp.float32),
    }


def prepare_weights(params):
    """One-time glue: transpose to [in, out], cast MXU operands to bf16, fold biases,
    and build the wrapper-side token-row gather table.  Call once per decode loop."""
    f32, bf16 = jnp.float32, jnp.bfloat16
    Y = params['wout'].shape[0]
    wih_t = params['wih'].T                      # [Y+E, 4H]
    whh_t = params['whh'].T                      # [H, 4H]
    return {
        'wq': params['wq'].T.astype(bf16),                                   # [H, A]
        'bqk': (params['bq'] + params['bv']).reshape(1, -1).astype(f32),     # [1, A]
        'wv': params['wv'].T.astype(bf16),                                   # [E, A]
        'vrow': params['vw'].reshape(1, -1).astype(f32),                     # [1, A]
        # token half of W_ih stays in HBM; only gathered [B,4H] rows reach the kernel
        'wih_tok_table': wih_t[:Y].astype(f32),                              # [Y, 4H]
        'lstm_bias': (params['bih'] + params['bhh']).reshape(1, -1).astype(f32),
        'wgates': jnp.concatenate([wih_t[Y:], whh_t], axis=0).astype(bf16),  # [E+H,4H]
        'wout': params['wout'].T.astype(bf16),                               # [H, Y]
        'bout': params['bout'].reshape(1, -1).astype(f32),                   # [1, Y]
    }


# ----------------------------------------------------------------------------------
# Tiling / VMEM budgeting
# ----------------------------------------------------------------------------------
def _choose_tiling(B, T, E, H, A, Y, pack):
    # Generation-aware scoped-VMEM budget (v7x: 64 MiB physical; v5e/v6e: 128 MiB).
    try:
        vmem_cap = pltpu.get_tpu_info().vmem_capacity_bytes
    except Exception:
        vmem_cap = 64 * 1024 * 1024          # conservative fallback (v7x-sized)
    vmem_limit = int(min(vmem_cap * 3 // 4, 100 * 1024 * 1024))

    # Pad batch so there are at least 2 grid steps on the "parallel" axis
    # (lets v7x's two TensorCores both run; harmless on v5e/v6e).
    Bp = _round_up(max(B, 2 * _SUBLANE), _SUBLANE)
    BB = min(128, _round_up(-(-Bp // 2), _SUBLANE))   # <=128 rows: MXU-friendly

    # Weights are double-buffered by the pipeline (constant index, so count 2x).
    weight_bytes = 2 * ((H * A + E * A + (E + H) * 4 * H + H * Y) * 2
                        + (2 * A + Y) * 4)

    def estimate(bb):
        io = bb * (T * E * 2 + 2 * H * 4 + 4 * H * 4 + pack * 4)  # pipelined blocks
        tmp = bb * (3 * T * A + 8 * H) * 4                        # f32 temporaries
        return 2 * io + tmp + weight_bytes

    # Shrink the batch tile until the working set fits ~60% of the scoped budget.
    while BB > _SUBLANE and estimate(BB) > vmem_limit * 6 // 10:
        BB -= _SUBLANE
    Bp = _round_up(Bp, BB)
    return BB, Bp, vmem_limit


# ----------------------------------------------------------------------------------
# Forward wrapper
# ----------------------------------------------------------------------------------
def attention_decoder_forward(prep, pre_y_token, pre_state_hc, encoder_output):
    f32, bf16 = jnp.float32, jnp.bfloat16
    h_prev, c_prev = pre_state_hc
    B, T, E = encoder_output.shape
    H = prep['wq'].shape[0]
    A = prep['wq'].shape[1]
    Y = prep['wout'].shape[1]

    OUT_P = _round_up(Y, _LANE)
    H_P = _round_up(H, _LANE)
    T_P = _round_up(T, _LANE)
    PACK = OUT_P + 2 * H_P + T_P

    BB, Bp, vmem_limit = _choose_tiling(B, T, E, H, A, Y, PACK)
    pad = Bp - B

    # Wrapper-side gather: one-hot @ W_ih[:, :Y].T  ==  row gather of the table.
    tok = pre_y_token.reshape(B).astype(jnp.int32)
    tok_rows = prep['wih_tok_table'][tok] + prep['lstm_bias']     # [B, 4H] f32

    h_p = jnp.pad(h_prev.astype(f32), ((0, pad), (0, 0)))
    c_p = jnp.pad(c_prev.astype(f32), ((0, pad), (0, 0)))
    enc_p = jnp.pad(encoder_output.astype(bf16), ((0, pad), (0, 0), (0, 0)))
    tokrow_p = jnp.pad(tok_rows.astype(f32), ((0, pad), (0, 0)))

    weights = (prep['wq'], prep['bqk'], prep['wv'], prep['vrow'],
               prep['wgates'], prep['wout'], prep['bout'])

    batch_specs = [
        pl.BlockSpec((BB, H), lambda i: (i, 0)),
        pl.BlockSpec((BB, H), lambda i: (i, 0)),
        pl.BlockSpec((BB, T, E), lambda i: (i, 0, 0)),
        pl.BlockSpec((BB, 4 * H), lambda i: (i, 0)),
    ]
    weight_specs = [pl.BlockSpec(w.shape, lambda i: (0, 0)) for w in weights]

    packed = pl.pallas_call(
        attention_decoder_kernel,
        grid=(Bp // BB,),
        in_specs=batch_specs + weight_specs,
        out_specs=pl.BlockSpec((BB, PACK), lambda i: (i, 0)),
        out_shape=jax.ShapeDtypeStruct((Bp, PACK), f32),
        compiler_params=pltpu.CompilerParams(
            dimension_semantics=("parallel",),
            vmem_limit_bytes=vmem_limit,
        ),
    )(h_p, c_p, enc_p, tokrow_p, *weights)

    out = packed[:B, 0:Y]
    h_new = packed[:B, OUT_P:OUT_P + H]
    c_new = packed[:B, OUT_P + H_P:OUT_P + H_P + H]
    attn = packed[:B, OUT_P + 2 * H_P:OUT_P + 2 * H_P + T]
    return out, (h_new, c_new), attn


# ----------------------------------------------------------------------------------
# Pure-JAX reference (mirrors the PyTorch module exactly, f32)
# ----------------------------------------------------------------------------------
def reference_forward(params, pre_y_token, pre_state_hc, encoder_output,
                      *, hidden_dim, y_dim):
    h, c_prev = pre_state_hc
    enc = encoder_output
    keys = jnp.einsum('bte,ae->bta', enc, params['wv']) + params['bv']
    query = h @ params['wq'].T + params['bq']
    e = jnp.einsum('bta,oa->bto', jnp.tanh(query[:, None, :] + keys),
                   params['vw'])[..., 0] + params['vb']
    a = jax.nn.softmax(e, axis=-1)
    ctx = jnp.einsum('bt,bte->be', a, enc)
    onehot = jax.nn.one_hot(pre_y_token, y_dim, dtype=jnp.float32)
    x = jnp.concatenate([onehot, ctx], axis=-1)
    gates = x @ params['wih'].T + params['bih'] + h @ params['whh'].T + params['bhh']
    H = hidden_dim
    i_g = jax.nn.sigmoid(gates[:, 0:H])
    f_g = jax.nn.sigmoid(gates[:, H:2 * H])
    g_g = jnp.tanh(gates[:, 2 * H:3 * H])
    o_g = jax.nn.sigmoid(gates[:, 3 * H:4 * H])
    c_new = f_g * c_prev + i_g * g_g
    h_new = o_g * jnp.tanh(c_new)
    out = h_new @ params['wout'].T + params['bout']
    return out, (h_new, c_new), a


if __name__ == "__main__":
    B, T = 2, 8
    hidden_dim, attention_dim, y_dim, encoder_output_dim = 32, 32, 16, 32

    key = jax.random.PRNGKey(0)
    k_par, k_tok, k_h, k_c, k_enc = jax.random.split(key, 5)

    params = init_params(k_par, hidden_dim, attention_dim, y_dim, encoder_output_dim)
    pre_y_token = jax.random.randint(k_tok, (B,), 0, y_dim, dtype=jnp.int32)
    h0 = 0.1 * jax.random.normal(k_h, (B, hidden_dim), jnp.float32)
    c0 = 0.1 * jax.random.normal(k_c, (B, hidden_dim), jnp.float32)
    encoder_output = jax.random.normal(k_enc, (B, T, encoder_output_dim), jnp.float32)

    prep = prepare_weights(params)   # hoisted one-time weight glue
    out, (h_new, c_new), attn = attention_decoder_forward(
        prep, pre_y_token, (h0, c0), encoder_output)
    jax.block_until_ready((out, h_new, c_new, attn))

    ref_out, (ref_h, ref_c), ref_a = reference_forward(
        params, pre_y_token, (h0, c0), encoder_output,
        hidden_dim=hidden_dim, y_dim=y_dim)

    # bf16 MXU operands / bf16 encoder input + approx reciprocal -> loosened tol.
    tol = 2e-2
    assert jnp.allclose(out, ref_out, atol=tol), "out mismatch"
    assert jnp.allclose(h_new, ref_h, atol=tol), "h mismatch"
    assert jnp.allclose(c_new, ref_c, atol=tol), "c mismatch"
    assert jnp.allclose(attn, ref_a, atol=tol), "attention mismatch"

    print("KERNEL_OK")
</pallas_src>

<mosaic_0001>
module attributes {stable_mosaic.version = 11 : i64} {
  func.func @attention_decoder_kernel(%arg0: i32, %arg1: memref<8x32xf32, #tpu.memory_space<vmem>>, %arg2: memref<8x32xf32, #tpu.memory_space<vmem>>, %arg3: memref<8x8x32xbf16, #tpu.memory_space<vmem>>, %arg4: memref<8x128xf32, #tpu.memory_space<vmem>>, %arg5: memref<32x32xbf16, #tpu.memory_space<vmem>>, %arg6: memref<1x32xf32, #tpu.memory_space<vmem>>, %arg7: memref<32x32xbf16, #tpu.memory_space<vmem>>, %arg8: memref<1x32xf32, #tpu.memory_space<vmem>>, %arg9: memref<64x128xbf16, #tpu.memory_space<vmem>>, %arg10: memref<32x16xbf16, #tpu.memory_space<vmem>>, %arg11: memref<1x16xf32, #tpu.memory_space<vmem>>, %arg12: memref<8x512xf32, #tpu.memory_space<vmem>>) attributes {dimension_semantics = [#tpu.dimension_semantics<parallel>], iteration_bounds = array<i64: 2>, scalar_prefetch = 0 : i64, scratch_operands = 0 : i64, tpu.core_type = #tpu.core_type<tc>, window_params = [{transform_indices = @transform_0, window_bounds = array<i64: 8, 32>}, {transform_indices = @transform_1, window_bounds = array<i64: 8, 32>}, {transform_indices = @transform_2, window_bounds = array<i64: 8, 8, 32>}, {transform_indices = @transform_3, window_bounds = array<i64: 8, 128>}, {pipeline_mode = #tpu.pipeline_mode<synchronous>, transform_indices = @transform_4, window_bounds = array<i64: 32, 32>}, {pipeline_mode = #tpu.pipeline_mode<synchronous>, transform_indices = @transform_5, window_bounds = array<i64: 1, 32>}, {pipeline_mode = #tpu.pipeline_mode<synchronous>, transform_indices = @transform_6, window_bounds = array<i64: 32, 32>}, {pipeline_mode = #tpu.pipeline_mode<synchronous>, transform_indices = @transform_7, window_bounds = array<i64: 1, 32>}, {pipeline_mode = #tpu.pipeline_mode<synchronous>, transform_indices = @transform_8, window_bounds = array<i64: 64, 128>}, {pipeline_mode = #tpu.pipeline_mode<synchronous>, transform_indices = @transform_9, window_bounds = array<i64: 32, 16>}, {pipeline_mode = #tpu.pipeline_mode<synchronous>, transform_indices = @transform_10, window_bounds = array<i64: 1, 16>}, {transform_indices = @transform_11, window_bounds = array<i64: 8, 512>}]} {
    %c0 = arith.constant 0 : index
    %c0_0 = arith.constant 0 : index
    %c0_1 = arith.constant 0 : index
    %0 = vector.load %arg3[%c0, %c0_0, %c0_1] : memref<8x8x32xbf16, #tpu.memory_space<vmem>>, vector<8x8x32xbf16>
    %c0_2 = arith.constant 0 : index
    %c0_3 = arith.constant 0 : index
    %1 = vector.load %arg1[%c0_2, %c0_3] : memref<8x32xf32, #tpu.memory_space<vmem>>, vector<8x32xf32>
    %c0_4 = arith.constant 0 : index
    %c0_5 = arith.constant 0 : index
    %2 = vector.load %arg2[%c0_4, %c0_5] : memref<8x32xf32, #tpu.memory_space<vmem>>, vector<8x32xf32>
    %3 = arith.truncf %1 : vector<8x32xf32> to vector<8x32xbf16>
    %4 = vector.shape_cast %0 : vector<8x8x32xbf16> to vector<64x32xbf16>
    %c0_6 = arith.constant 0 : index
    %c0_7 = arith.constant 0 : index
    %5 = vector.load %arg7[%c0_6, %c0_7] : memref<32x32xbf16, #tpu.memory_space<vmem>>, vector<32x32xbf16>
    %cst = arith.constant dense<0.000000e+00> : vector<64x32xf32>
    %6 = tpu.matmul %4, %5, %cst {dimension_numbers = #tpu.dot_dimension_numbers<[1], [0], [0], [1], [0, 0, 1, 1], [], []>} : vector<64x32xbf16>, vector<32x32xbf16>, vector<64x32xf32> -> vector<64x32xf32>
    %7 = vector.shape_cast %6 : vector<64x32xf32> to vector<8x8x32xf32>
    %c0_8 = arith.constant 0 : index
    %c0_9 = arith.constant 0 : index
    %8 = vector.load %arg5[%c0_8, %c0_9] : memref<32x32xbf16, #tpu.memory_space<vmem>>, vector<32x32xbf16>
    %cst_10 = arith.constant dense<0.000000e+00> : vector<8x32xf32>
    %9 = tpu.matmul %3, %8, %cst_10 {dimension_numbers = #tpu.dot_dimension_numbers<[1], [0], [0], [1], [0, 0, 1, 1], [], []>} : vector<8x32xbf16>, vector<32x32xbf16>, vector<8x32xf32> -> vector<8x32xf32>
    %c0_11 = arith.constant 0 : index
    %c0_12 = arith.constant 0 : index
    %10 = vector.load %arg6[%c0_11, %c0_12] : memref<1x32xf32, #tpu.memory_space<vmem>>, vector<1x32xf32>
    %11 = vector.broadcast %10 : vector<1x32xf32> to vector<8x32xf32>
    %12 = arith.addf %9, %11 : vector<8x32xf32>
    %13 = vector.shape_cast %12 : vector<8x32xf32> to vector<8x1x32xf32>
    %14 = vector.broadcast %13 : vector<8x1x32xf32> to vector<8x8x32xf32>
    %15 = arith.addf %14, %7 : vector<8x8x32xf32>
    %16 = math.tanh %15 : vector<8x8x32xf32>
    %c0_13 = arith.constant 0 : index
    %c0_14 = arith.constant 0 : index
    %17 = vector.load %arg8[%c0_13, %c0_14] : memref<1x32xf32, #tpu.memory_space<vmem>>, vector<1x32xf32>
    %18 = vector.shape_cast %17 : vector<1x32xf32> to vector<1x1x32xf32>
    %19 = vector.broadcast %18 : vector<1x1x32xf32> to vector<8x8x32xf32>
    %20 = arith.mulf %16, %19 : vector<8x8x32xf32>
    %cst_15 = arith.constant dense<0.000000e+00> : vector<8x8xf32>
    %21 = vector.multi_reduction <add>, %20, %cst_15 [2] : vector<8x8x32xf32> to vector<8x8xf32>
    %cst_16 = arith.constant dense<0xFF800000> : vector<8xf32>
    %22 = vector.multi_reduction <maximumf>, %21, %cst_16 [1] : vector<8x8xf32> to vector<8xf32>
    %23 = vector.shape_cast %22 : vector<8xf32> to vector<8x1xf32>
    %24 = vector.broadcast %23 : vector<8x1xf32> to vector<8x8xf32>
    %25 = arith.subf %21, %24 : vector<8x8xf32>
    %26 = math.exp %25 : vector<8x8xf32>
    %cst_17 = arith.constant dense<0.000000e+00> : vector<8xf32>
    %27 = vector.multi_reduction <add>, %26, %cst_17 [1] : vector<8x8xf32> to vector<8xf32>
    %28 = vector.shape_cast %27 : vector<8xf32> to vector<8x1xf32>
    %29 = tpu.reciprocal %28 {approx = true} : vector<8x1xf32> -> vector<8x1xf32>
    %30 = vector.broadcast %29 : vector<8x1xf32> to vector<8x8xf32>
    %31 = arith.mulf %26, %30 : vector<8x8xf32>
    %32 = vector.shape_cast %31 : vector<8x8xf32> to vector<8x8x1xf32>
    %33 = arith.extf %0 : vector<8x8x32xbf16> to vector<8x8x32xf32>
    %34 = vector.broadcast %32 : vector<8x8x1xf32> to vector<8x8x32xf32>
    %35 = arith.mulf %34, %33 : vector<8x8x32xf32>
    %cst_18 = arith.constant dense<0.000000e+00> : vector<8x32xf32>
    %36 = vector.multi_reduction <add>, %35, %cst_18 [1] : vector<8x8x32xf32> to vector<8x32xf32>
    %37 = arith.truncf %36 : vector<8x32xf32> to vector<8x32xbf16>
    %38 = tpu.concatenate %37, %3 in 1 : vector<8x32xbf16>, vector<8x32xbf16> -> vector<8x64xbf16>
    %c0_19 = arith.constant 0 : index
    %c0_20 = arith.constant 0 : index
    %39 = vector.load %arg4[%c0_19, %c0_20] : memref<8x128xf32, #tpu.memory_space<vmem>>, vector<8x128xf32>
    %c0_21 = arith.constant 0 : index
    %c0_22 = arith.constant 0 : index
    %40 = vector.load %arg9[%c0_21, %c0_22] : memref<64x128xbf16, #tpu.memory_space<vmem>>, vector<64x128xbf16>
    %cst_23 = arith.constant dense<0.000000e+00> : vector<8x128xf32>
    %41 = tpu.matmul %38, %40, %cst_23 {dimension_numbers = #tpu.dot_dimension_numbers<[1], [0], [0], [1], [0, 0, 1, 1], [], []>} : vector<8x64xbf16>, vector<64x128xbf16>, vector<8x128xf32> -> vector<8x128xf32>
    %42 = arith.addf %39, %41 : vector<8x128xf32>
    %43 = vector.extract_strided_slice %42 {offsets = [0, 0], sizes = [8, 32], strides = [1, 1]} : vector<8x128xf32> to vector<8x32xf32>
    %cst_24 = arith.constant 5.000000e-01 : f32
    %44 = vector.broadcast %cst_24 : f32 to vector<8x32xf32>
    %45 = arith.mulf %44, %43 : vector<8x32xf32>
    %46 = math.tanh %45 : vector<8x32xf32>
    %cst_25 = arith.constant 1.000000e+00 : f32
    %47 = vector.broadcast %cst_25 : f32 to vector<8x32xf32>
    %48 = arith.addf %46, %47 : vector<8x32xf32>
    %cst_26 = arith.constant 5.000000e-01 : f32
    %49 = vector.broadcast %cst_26 : f32 to vector<8x32xf32>
    %50 = arith.mulf %49, %48 : vector<8x32xf32>
    %51 = vector.extract_strided_slice %42 {offsets = [0, 32], sizes = [8, 32], strides = [1, 1]} : vector<8x128xf32> to vector<8x32xf32>
    %cst_27 = arith.constant 5.000000e-01 : f32
    %52 = vector.broadcast %cst_27 : f32 to vector<8x32xf32>
    %53 = arith.mulf %52, %51 : vector<8x32xf32>
    %54 = math.tanh %53 : vector<8x32xf32>
    %cst_28 = arith.constant 1.000000e+00 : f32
    %55 = vector.broadcast %cst_28 : f32 to vector<8x32xf32>
    %56 = arith.addf %54, %55 : vector<8x32xf32>
    %cst_29 = arith.constant 5.000000e-01 : f32
    %57 = vector.broadcast %cst_29 : f32 to vector<8x32xf32>
    %58 = arith.mulf %57, %56 : vector<8x32xf32>
    %59 = vector.extract_strided_slice %42 {offsets = [0, 64], sizes = [8, 32], strides = [1, 1]} : vector<8x128xf32> to vector<8x32xf32>
    %60 = math.tanh %59 : vector<8x32xf32>
    %61 = vector.extract_strided_slice %42 {offsets = [0, 96], sizes = [8, 32], strides = [1, 1]} : vector<8x128xf32> to vector<8x32xf32>
    %cst_30 = arith.constant 5.000000e-01 : f32
    %62 = vector.broadcast %cst_30 : f32 to vector<8x32xf32>
    %63 = arith.mulf %62, %61 : vector<8x32xf32>
    %64 = math.tanh %63 : vector<8x32xf32>
    %cst_31 = arith.constant 1.000000e+00 : f32
    %65 = vector.broadcast %cst_31 : f32 to vector<8x32xf32>
    %66 = arith.addf %64, %65 : vector<8x32xf32>
    %cst_32 = arith.constant 5.000000e-01 : f32
    %67 = vector.broadcast %cst_32 : f32 to vector<8x32xf32>
    %68 = arith.mulf %67, %66 : vector<8x32xf32>
    %69 = arith.mulf %58, %2 : vector<8x32xf32>
    %70 = arith.mulf %50, %60 : vector<8x32xf32>
    %71 = arith.addf %69, %70 : vector<8x32xf32>
    %72 = math.tanh %71 : vector<8x32xf32>
    %73 = arith.mulf %68, %72 : vector<8x32xf32>
    %74 = arith.truncf %73 : vector<8x32xf32> to vector<8x32xbf16>
    %c0_33 = arith.constant 0 : index
    %c0_34 = arith.constant 0 : index
    %75 = vector.load %arg10[%c0_33, %c0_34] : memref<32x16xbf16, #tpu.memory_space<vmem>>, vector<32x16xbf16>
    %cst_35 = arith.constant dense<0.000000e+00> : vector<8x16xf32>
    %76 = tpu.matmul %74, %75, %cst_35 {dimension_numbers = #tpu.dot_dimension_numbers<[1], [0], [0], [1], [0, 0, 1, 1], [], []>} : vector<8x32xbf16>, vector<32x16xbf16>, vector<8x16xf32> -> vector<8x16xf32>
    %c0_36 = arith.constant 0 : index
    %c0_37 = arith.constant 0 : index
    %77 = vector.load %arg11[%c0_36, %c0_37] : memref<1x16xf32, #tpu.memory_space<vmem>>, vector<1x16xf32>
    %78 = vector.broadcast %77 : vector<1x16xf32> to vector<8x16xf32>
    %79 = arith.addf %76, %78 : vector<8x16xf32>
    %cst_38 = arith.constant 0.000000e+00 : f32
    %80 = vector.broadcast %cst_38 : f32 to vector<8x112xf32>
    %81 = tpu.concatenate %79, %80 in 1 : vector<8x16xf32>, vector<8x112xf32> -> vector<8x128xf32>
    %cst_39 = arith.constant 0.000000e+00 : f32
    %82 = vector.broadcast %cst_39 : f32 to vector<8x96xf32>
    %83 = tpu.concatenate %73, %82 in 1 : vector<8x32xf32>, vector<8x96xf32> -> vector<8x128xf32>
    %cst_40 = arith.constant 0.000000e+00 : f32
    %84 = vector.broadcast %cst_40 : f32 to vector<8x96xf32>
    %85 = tpu.concatenate %71, %84 in 1 : vector<8x32xf32>, vector<8x96xf32> -> vector<8x128xf32>
    %cst_41 = arith.constant 0.000000e+00 : f32
    %86 = vector.broadcast %cst_41 : f32 to vector<8x120xf32>
    %87 = tpu.concatenate %31, %86 in 1 : vector<8x8xf32>, vector<8x120xf32> -> vector<8x128xf32>
    %88 = tpu.concatenate %81, %83, %85, %87 in 1 : vector<8x128xf32>, vector<8x128xf32>, vector<8x128xf32>, vector<8x128xf32> -> vector<8x512xf32>
    %c0_42 = arith.constant 0 : index
    %c0_43 = arith.constant 0 : index
    %89 = vector.load %arg12[%c0_42, %c0_43] : memref<8x512xf32, #tpu.memory_space<vmem>>, vector<8x512xf32>
    tpu.vector_store %arg12[%c0_42, %c0_43], %88 {strides = array<i32>} : memref<8x512xf32, #tpu.memory_space<vmem>>, vector<8x512xf32>,
    return
  }
  func.func @transform_0(%arg0: i32) -> (i32, i32) {
    %c0_i32 = arith.constant 0 : i32
    %c0_i32_0 = arith.constant 0 : i32
    return %arg0, %c0_i32 : i32, i32
  }
  func.func @transform_1(%arg0: i32) -> (i32, i32) {
    %c0_i32 = arith.constant 0 : i32
    %c0_i32_0 = arith.constant 0 : i32
    return %arg0, %c0_i32 : i32, i32
  }
  func.func @transform_2(%arg0: i32) -> (i32, i32, i32) {
    %c0_i32 = arith.constant 0 : i32
    %c0_i32_0 = arith.constant 0 : i32
    %c0_i32_1 = arith.constant 0 : i32
    return %arg0, %c0_i32, %c0_i32_0 : i32, i32, i32
  }
  func.func @transform_3(%arg0: i32) -> (i32, i32) {
    %c0_i32 = arith.constant 0 : i32
    %c0_i32_0 = arith.constant 0 : i32
    return %arg0, %c0_i32 : i32, i32
  }
  func.func @transform_4(%arg0: i32) -> (i32, i32) {
    %c0_i32 = arith.constant 0 : i32
    %c0_i32_0 = arith.constant 0 : i32
    %c0_i32_1 = arith.constant 0 : i32
    return %c0_i32, %c0_i32_0 : i32, i32
  }
  func.func @transform_5(%arg0: i32) -> (i32, i32) {
    %c0_i32 = arith.constant 0 : i32
    %c0_i32_0 = arith.constant 0 : i32
    %c0_i32_1 = arith.constant 0 : i32
    return %c0_i32, %c0_i32_0 : i32, i32
  }
  func.func @transform_6(%arg0: i32) -> (i32, i32) {
    %c0_i32 = arith.constant 0 : i32
    %c0_i32_0 = arith.constant 0 : i32
    %c0_i32_1 = arith.constant 0 : i32
    return %c0_i32, %c0_i32_0 : i32, i32
  }
  func.func @transform_7(%arg0: i32) -> (i32, i32) {
    %c0_i32 = arith.constant 0 : i32
    %c0_i32_0 = arith.constant 0 : i32
    %c0_i32_1 = arith.constant 0 : i32
    return %c0_i32, %c0_i32_0 : i32, i32
  }
  func.func @transform_8(%arg0: i32) -> (i32, i32) {
    %c0_i32 = arith.constant 0 : i32
    %c0_i32_0 = arith.constant 0 : i32
    %c0_i32_1 = arith.constant 0 : i32
    return %c0_i32, %c0_i32_0 : i32, i32
  }
  func.func @transform_9(%arg0: i32) -> (i32, i32) {
    %c0_i32 = arith.constant 0 : i32
    %c0_i32_0 = arith.constant 0 : i32
    %c0_i32_1 = arith.constant 0 : i32
    return %c0_i32, %c0_i32_0 : i32, i32
  }
  func.func @transform_10(%arg0: i32) -> (i32, i32) {
    %c0_i32 = arith.constant 0 : i32
    %c0_i32_0 = arith.constant 0 : i32
    %c0_i32_1 = arith.constant 0 : i32
    return %c0_i32, %c0_i32_0 : i32, i32
  }
  func.func @transform_11(%arg0: i32) -> (i32, i32) {
    %c0_i32 = arith.constant 0 : i32
    %c0_i32_0 = arith.constant 0 : i32
    return %arg0, %c0_i32 : i32, i32
  }
}

</mosaic_0001>

<llo_original>
// kernel: tpu_custom_call.1
$region0: #{tpu_custom_call.1}
  #allocation0 [shape = 'u32[]', space=smem, size = 0x4, offset = 0x4, fixed_abs, tag = 'smem constant byte address 0x4 - core index']
  #allocation1 [shape = 'u32[144,128]{1,0:T(1,128)}', space=vmem, size = 0x12000, scoped, tag = 'internal scratch']
  %s0 = inlined_call_operand.vmem [shape: f32[16,32], index: 0, kind: input, shape index: {}]
  %s1 = inlined_call_operand.hbm [shape: f32[16,32], index: 1, kind: input, shape index: {}]
  %s2 = inlined_call_operand.hbm [shape: bf16[16,8,32], index: 2, kind: input, shape index: {}]
  %s3 = inlined_call_operand.hbm [shape: f32[16,128], index: 3, kind: input, shape index: {}]
  %s4 = inlined_call_operand.hbm [shape: bf16[32,32], index: 4, kind: input, shape index: {}]
  %s5 = inlined_call_operand.vmem [shape: f32[1,32], index: 5, kind: input, shape index: {}]
  %s6 = inlined_call_operand.hbm [shape: bf16[32,32], index: 6, kind: input, shape index: {}]
  %s7 = inlined_call_operand.vmem [shape: f32[1,32], index: 7, kind: input, shape index: {}]
  %s8 = inlined_call_operand.vmem [shape: bf16[64,128], index: 8, kind: input, shape index: {}]
  %s9 = inlined_call_operand.vmem [shape: bf16[32,16], index: 9, kind: input, shape index: {}]
  %s10 = inlined_call_operand.vmem [shape: f32[1,16], index: 10, kind: input, shape index: {}]
  %s11 = inlined_call_operand.hbm [shape: f32[16,512], index: 11, kind: output, shape index: {}]
  %s12 = sld [smem:[#allocation0]]
  $region97: #{tpu_custom_call.1} parent=0
    _
  %s14 = ssub.s32 1, %s12
  %s15 = scalar_select 0, %s14, %s12
  $region1: #{tpu_custom_call.1} parent=0
    #allocation2 [shape = 'u8[8192]{0}', space=vmem, size = 0x2000, scoped, tag = 'input window, operand 1']
    #allocation3 [shape = 's32[2]{0}', space=sflag, size = 0x8, scoped, tag = 'scoped memory for tpu_custom_call.1']
    #allocation4 [shape = 's32[2]{0}', space=sflag, size = 0x8, scoped, tag = 'scoped memory for tpu_custom_call.1']
    #allocation5 [shape = 'u8[32768]{0}', space=vmem, size = 0x8000, scoped, tag = 'input window, operand 2']
    #allocation6 [shape = 's32[2]{0}', space=sflag, size = 0x8, scoped, tag = 'scoped memory for tpu_custom_call.1']
    #allocation7 [shape = 'u8[8192]{0}', space=vmem, size = 0x2000, scoped, tag = 'input window, operand 3']
    #allocation8 [shape = 'u8[8192]{0}', space=vmem, size = 0x2000, scoped, tag = 'input window, operand 4, single buffered']
    #allocation9 [shape = 's32[1]{0}', space=sflag, size = 0x4, scoped, tag = 'scoped memory for tpu_custom_call.1']
    #allocation10 [shape = 'u8[8192]{0}', space=vmem, size = 0x2000, scoped, tag = 'input window, operand 6, single buffered']
    #allocation11 [shape = 'u8[32768]{0}', space=vmem, size = 0x8000, scoped, tag = 'output window, operand 0']
    %16 = vsyncpa [#allocation3], 0
    %s17 = scalar_lea.sflag [#allocation3], 1
    %18 = vsyncpa %s17, 0
    %19 = vsyncpa [#allocation6], 0
    %s20 = scalar_lea.sflag [#allocation6], 1
    %21 = vsyncpa %s20, 0
    %22 = vsyncpa [#allocation9], 0
    %23 = vsyncpa [#allocation4], 0
    %s24 = scalar_lea.sflag [#allocation4], 1
    %25 = vsyncpa %s24, 0
    loop: start=0, step=1, limit=4
    $region2: #{tpu_custom_call.1} parent=1 // loop_pre_header
      _
    $region3: #{tpu_custom_call.1} parent=1 // loop_header
      %s27 = sphi 0, %s31
      %p28 = scmp.ge.s32.totalorder %s27, 4
      %s37 = sphi 0, %s39
      %s40 = sphi 0, %s37
      %s41 = sphi 0, %s40
      %s57 = sphi 0, %s41
      %s63 = sphi 0, %s65
      %s66 = sphi 0, %s63
      %s67 = sphi 0, %s66
      %s83 = sphi 0, %s67
      %s89 = sphi 0, %s91
      %s92 = sphi 0, %s89
      %s93 = sphi 0, %s92
      %s109 = sphi 0, %s93
      %s115 = sphi 0, %s117
      %s118 = sphi 0, %s115
      %s119 = sphi 0, %s118
      %s135 = sphi 0, %s119
      %s139 = sphi 0, %s139
      %s141 = sphi 0, %s139
      %s142 = sphi 0, %s141
      %s156 = sphi 0, %s142
      %s160 = sphi 0, %s160
      %s162 = sphi 0, %s160
      %s163 = sphi 0, %s162
      %s177 = sphi 0, %s163
      %s181 = sphi 0, %s181
      %s183 = sphi 0, %s181
      %s184 = sphi 0, %s183
      %s198 = sphi 0, %s184
      %s202 = sphi 0, %s202
      %s204 = sphi 0, %s202
      %s205 = sphi 0, %s204
      %s219 = sphi 0, %s205
      %s223 = sphi 0, %s223
      %s225 = sphi 0, %s223
      %s226 = sphi 0, %s225
      %s240 = sphi 0, %s226
      %s244 = sphi 0, %s244
      %s246 = sphi 0, %s244
      %s247 = sphi 0, %s246
      %s261 = sphi 0, %s247
      %s265 = sphi 0, %s265
      %s267 = sphi 0, %s265
      %s268 = sphi 0, %s267
      %s282 = sphi 0, %s268
      %s288 = sphi 0, %s290
      %s291 = sphi 0, %s288
      %s292 = sphi 0, %s291
      %s308 = sphi 0, %s292
    $region4: #{tpu_custom_call.1} parent=1 // loop_header_branch
      %30 = sbr.rel (%p28) target = $region8
    $region5: #{tpu_custom_call.1} parent=1 // loop_body
      %s32 = ssub.s32 %s27, 1
      %s33 = ssub.s32 %s27, 2
      %s34 = sadd.s32 %s27, 1
      %s35 = ssub.s32 %s27, %s34
      %p36 = scmp.eq.s32.totalorder %s35, 0
      %s38 = sadd.s32 %s37, 1
      %s39 = scalar_select %p36, %s37, %s38
      %p42 = pneg %p36
      %p43 = scmp.eq.s32.totalorder %s27, 1
      %p44 = por %p42, %p43
      %p45 = scmp.ne.s32.totalorder %s37, %s40
      %p46 = scmp.eq.s32.totalorder %s27, 0
      %p47 = por %p45, %p46
      %p48 = scmp.ne.s32.totalorder %s37, %s40
      %p49 = scmp.eq.s32.totalorder %s32, 1
      %p50 = por %p48, %p49
      %p51 = scmp.ne.s32.totalorder %s40, %s41
      %p52 = scmp.eq.s32.totalorder %s32, 0
      %p53 = por %p51, %p52
      %p54 = scmp.ne.s32.totalorder %s40, %s41
      %p55 = scmp.eq.s32.totalorder %s33, 1
      %p56 = por %p54, %p55
      %p58 = scmp.ne.s32.totalorder %s41, %s57
      %p59 = scmp.eq.s32.totalorder %s33, 0
      %p60 = por %p58, %p59
      %s61 = ssub.s32 %s27, %s34
      %p62 = scmp.eq.s32.totalorder %s61, 0
      %s64 = sadd.s32 %s63, 1
      %s65 = scalar_select %p62, %s63, %s64
      %p68 = pneg %p62
      %p69 = scmp.eq.s32.totalorder %s27, 1
      %p70 = por %p68, %p69
      %p71 = scmp.ne.s32.totalorder %s63, %s66
      %p72 = scmp.eq.s32.totalorder %s27, 0
      %p73 = por %p71, %p72
      %p74 = scmp.ne.s32.totalorder %s63, %s66
      %p75 = scmp.eq.s32.totalorder %s32, 1
      %p76 = por %p74, %p75
      %p77 = scmp.ne.s32.totalorder %s66, %s67
      %p78 = scmp.eq.s32.totalorder %s32, 0
      %p79 = por %p77, %p78
      %p80 = scmp.ne.s32.totalorder %s66, %s67
      %p81 = scmp.eq.s32.totalorder %s33, 1
      %p82 = por %p80, %p81
      %p84 = scmp.ne.s32.totalorder %s67, %s83
      %p85 = scmp.eq.s32.totalorder %s33, 0
      %p86 = por %p84, %p85
      %s87 = ssub.s32 %s27, %s34
      %p88 = scmp.eq.s32.totalorder %s87, 0
      %s90 = sadd.s32 %s89, 1
      %s91 = scalar_select %p88, %s89, %s90
      %p94 = pneg %p88
      %p95 = scmp.eq.s32.totalorder %s27, 1
      %p96 = por %p94, %p95
      %p97 = scmp.ne.s32.totalorder %s89, %s92
      %p98 = scmp.eq.s32.totalorder %s27, 0
      %p99 = por %p97, %p98
      %p100 = scmp.ne.s32.totalorder %s89, %s92
      %p101 = scmp.eq.s32.totalorder %s32, 1
      %p102 = por %p100, %p101
      %p103 = scmp.ne.s32.totalorder %s92, %s93
      %p104 = scmp.eq.s32.totalorder %s32, 0
      %p105 = por %p103, %p104
      %p106 = scmp.ne.s32.totalorder %s92, %s93
      %p107 = scmp.eq.s32.totalorder %s33, 1
      %p108 = por %p106, %p107
      %p110 = scmp.ne.s32.totalorder %s93, %s109
      %p111 = scmp.eq.s32.totalorder %s33, 0
      %p112 = por %p110, %p111
      %s113 = ssub.s32 %s27, %s34
      %p114 = scmp.eq.s32.totalorder %s113, 0
      %s116 = sadd.s32 %s115, 1
      %s117 = scalar_select %p114, %s115, %s116
      %p120 = pneg %p114
      %p121 = scmp.eq.s32.totalorder %s27, 1
      %p122 = por %p120, %p121
      %p123 = scmp.ne.s32.totalorder %s115, %s118
      %p124 = scmp.eq.s32.totalorder %s27, 0
      %p125 = por %p123, %p124
      %p126 = scmp.ne.s32.totalorder %s115, %s118
      %p127 = scmp.eq.s32.totalorder %s32, 1
      %p128 = por %p126, %p127
      %p129 = scmp.ne.s32.totalorder %s118, %s119
      %p130 = scmp.eq.s32.totalorder %s32, 0
      %p131 = por %p129, %p130
      %p132 = scmp.ne.s32.totalorder %s118, %s119
      %p133 = scmp.eq.s32.totalorder %s33, 1
      %p134 = por %p132, %p133
      %p136 = scmp.ne.s32.totalorder %s119, %s135
      %p137 = scmp.eq.s32.totalorder %s33, 0
      %p138 = por %p136, %p137
      %s140 = sadd.s32 %s139, 1
      %p143 = scmp.eq.s32.totalorder %s27, 1
      %p144 = scmp.ne.s32.totalorder %s139, %s141
      %p145 = scmp.eq.s32.totalorder %s27, 0
      %p146 = por %p144, %p145
      %p147 = scmp.ne.s32.totalorder %s139, %s141
      %p148 = scmp.eq.s32.totalorder %s32, 1
      %p149 = por %p147, %p148
      %p150 = scmp.ne.s32.totalorder %s141, %s142
      %p151 = scmp.eq.s32.totalorder %s32, 0
      %p152 = por %p150, %p151
      %p153 = scmp.ne.s32.totalorder %s141, %s142
      %p154 = scmp.eq.s32.totalorder %s33, 1
      %p155 = por %p153, %p154
      %p157 = scmp.ne.s32.totalorder %s142, %s156
      %p158 = scmp.eq.s32.totalorder %s33, 0
      %p159 = por %p157, %p158
      %s161 = sadd.s32 %s160, 1
      %p164 = scmp.eq.s32.totalorder %s27, 1
      %p165 = scmp.ne.s32.totalorder %s160, %s162
      %p166 = scmp.eq.s32.totalorder %s27, 0
      %p167 = por %p165, %p166
      %p168 = scmp.ne.s32.totalorder %s160, %s162
      %p169 = scmp.eq.s32.totalorder %s32, 1
      %p170 = por %p168, %p169
      %p171 = scmp.ne.s32.totalorder %s162, %s163
      %p172 = scmp.eq.s32.totalorder %s32, 0
      %p173 = por %p171, %p172
      %p174 = scmp.ne.s32.totalorder %s162, %s163
      %p175 = scmp.eq.s32.totalorder %s33, 1
      %p176 = por %p174, %p175
      %p178 = scmp.ne.s32.totalorder %s163, %s177
      %p179 = scmp.eq.s32.totalorder %s33, 0
      %p180 = por %p178, %p179
      %s182 = sadd.s32 %s181, 1
      %p185 = scmp.eq.s32.totalorder %s27, 1
      %p186 = scmp.ne.s32.totalorder %s181, %s183
      %p187 = scmp.eq.s32.totalorder %s27, 0
      %p188 = por %p186, %p187
      %p189 = scmp.ne.s32.totalorder %s181, %s183
      %p190 = scmp.eq.s32.totalorder %s32, 1
      %p191 = por %p189, %p190
      %p192 = scmp.ne.s32.totalorder %s183, %s184
      %p193 = scmp.eq.s32.totalorder %s32, 0
      %p194 = por %p192, %p193
      %p195 = scmp.ne.s32.totalorder %s183, %s184
      %p196 = scmp.eq.s32.totalorder %s33, 1
      %p197 = por %p195, %p196
      %p199 = scmp.ne.s32.totalorder %s184, %s198
      %p200 = scmp.eq.s32.totalorder %s33, 0
      %p201 = por %p199, %p200
      %s203 = sadd.s32 %s202, 1
      %p206 = scmp.eq.s32.totalorder %s27, 1
      %p207 = scmp.ne.s32.totalorder %s202, %s204
      %p208 = scmp.eq.s32.totalorder %s27, 0
      %p209 = por %p207, %p208
      %p210 = scmp.ne.s32.totalorder %s202, %s204
      %p211 = scmp.eq.s32.totalorder %s32, 1
      %p212 = por %p210, %p211
      %p213 = scmp.ne.s32.totalorder %s204, %s205
      %p214 = scmp.eq.s32.totalorder %s32, 0
      %p215 = por %p213, %p214
      %p216 = scmp.ne.s32.totalorder %s204, %s205
      %p217 = scmp.eq.s32.totalorder %s33, 1
      %p218 = por %p216, %p217
      %p220 = scmp.ne.s32.totalorder %s205, %s219
      %p221 = scmp.eq.s32.totalorder %s33, 0
      %p222 = por %p220, %p221
      %s224 = sadd.s32 %s223, 1
      %p227 = scmp.eq.s32.totalorder %s27, 1
      %p228 = scmp.ne.s32.totalorder %s223, %s225
      %p229 = scmp.eq.s32.totalorder %s27, 0
      %p230 = por %p228, %p229
      %p231 = scmp.ne.s32.totalorder %s223, %s225
      %p232 = scmp.eq.s32.totalorder %s32, 1
      %p233 = por %p231, %p232
      %p234 = scmp.ne.s32.totalorder %s225, %s226
      %p235 = scmp.eq.s32.totalorder %s32, 0
      %p236 = por %p234, %p235
      %p237 = scmp.ne.s32.totalorder %s225, %s226
      %p238 = scmp.eq.s32.totalorder %s33, 1
      %p239 = por %p237, %p238
      %p241 = scmp.ne.s32.totalorder %s226, %s240
      %p242 = scmp.eq.s32.totalorder %s33, 0
      %p243 = por %p241, %p242
      %s245 = sadd.s32 %s244, 1
      %p248 = scmp.eq.s32.totalorder %s27, 1
      %p249 = scmp.ne.s32.totalorder %s244, %s246
      %p250 = scmp.eq.s32.totalorder %s27, 0
      %p251 = por %p249, %p250
      %p252 = scmp.ne.s32.totalorder %s244, %s246
      %p253 = scmp.eq.s32.totalorder %s32, 1
      %p254 = por %p252, %p253
      %p255 = scmp.ne.s32.totalorder %s246, %s247
      %p256 = scmp.eq.s32.totalorder %s32, 0
      %p257 = por %p255, %p256
      %p258 = scmp.ne.s32.totalorder %s246, %s247
      %p259 = scmp.eq.s32.totalorder %s33, 1
      %p260 = por %p258, %p259
      %p262 = scmp.ne.s32.totalorder %s247, %s261
      %p263 = scmp.eq.s32.totalorder %s33, 0
      %p264 = por %p262, %p263
      %s266 = sadd.s32 %s265, 1
      %p269 = scmp.eq.s32.totalorder %s27, 1
      %p270 = scmp.ne.s32.totalorder %s265, %s267
      %p271 = scmp.eq.s32.totalorder %s27, 0
      %p272 = por %p270, %p271
      %p273 = scmp.ne.s32.totalorder %s265, %s267
      %p274 = scmp.eq.s32.totalorder %s32, 1
      %p275 = por %p273, %p274
      %p276 = scmp.ne.s32.totalorder %s267, %s268
      %p277 = scmp.eq.s32.totalorder %s32, 0
      %p278 = por %p276, %p277
      %p279 = scmp.ne.s32.totalorder %s267, %s268
      %p280 = scmp.eq.s32.totalorder %s33, 1
      %p281 = por %p279, %p280
      %p283 = scmp.ne.s32.totalorder %s268, %s282
      %p284 = scmp.eq.s32.totalorder %s33, 0
      %p285 = por %p283, %p284
      %s286 = ssub.s32 %s27, %s34
      %p287 = scmp.eq.s32.totalorder %s286, 0
      %s289 = sadd.s32 %s288, 1
      %s290 = scalar_select %p287, %s288, %s289
      %p293 = pneg %p287
      %p294 = scmp.eq.s32.totalorder %s27, 1
      %p295 = por %p293, %p294
      %p296 = scmp.ne.s32.totalorder %s288, %s291
      %p297 = scmp.eq.s32.totalorder %s27, 0
      %p298 = por %p296, %p297
      %p299 = scmp.ne.s32.totalorder %s288, %s291
      %p300 = scmp.eq.s32.totalorder %s32, 1
      %p301 = por %p299, %p300
      %p302 = scmp.ne.s32.totalorder %s291, %s292
      %p303 = scmp.eq.s32.totalorder %s32, 0
      %p304 = por %p302, %p303
      %p305 = scmp.ne.s32.totalorder %s291, %s292
      %p306 = scmp.eq.s32.totalorder %s33, 1
      %p307 = por %p305, %p306
      %p309 = scmp.ne.s32.totalorder %s292, %s308
      %p310 = scmp.eq.s32.totalorder %s33, 0
      %p311 = por %p309, %p310
      %p312 = scmp.le.s32.totalorder 1, %s27
      %p313 = scmp.lt.s32.totalorder %s27, 3
      %p314 = pnand %p312, %p313
      %p315 = pneg %p314
      // Predicated region
      $region9: #{tpu_custom_call.1} parent=5 // pred_check
        _
      $region10: #{tpu_custom_call.1} parent=5 // pred_check_branch
        %317 = sbr.rel (%p314) target = $region12
      $region11: #{tpu_custom_call.1} parent=5 // pred_region
        %s318 = ssub.s32 %s27, 1
        // Predicated region
        $region13: #{tpu_custom_call.1} parent=11 // pred_check
          %p319 = pneg %p152
        $region14: #{tpu_custom_call.1} parent=11 // pred_check_branch
          %321 = sbr.rel (%p319) target = $region16
        $region15: #{tpu_custom_call.1} parent=11 // pred_region
          %s323 = ssub.s32 256, 256
          %324 = vsyncadd [#allocation9], %s323
          %s325 = sshll.u32 [#allocation8], 4
          %s326 = int_to_ptr.vmem [resolvable:$true] %s325
          %331 = dma.hbm_to_vmem [thread:$0]  %s4, 256, %s326, [#allocation9], 64, 64, 4
        $region16: #{tpu_custom_call.1} parent=11 // pred_fallthru
          _
        // Predicated region
        $region17: #{tpu_custom_call.1} parent=11 // pred_check
          %p332 = pneg %p173
        $region18: #{tpu_custom_call.1} parent=11 // pred_check_branch
          %334 = sbr.rel (%p332) target = $region20
        $region19: #{tpu_custom_call.1} parent=11 // pred_region
          _
        $region20: #{tpu_custom_call.1} parent=11 // pred_fallthru
          _
        // Predicated region
        $region21: #{tpu_custom_call.1} parent=11 // pred_check
          %p335 = pneg %p194
        $region22: #{tpu_custom_call.1} parent=11 // pred_check_branch
          %337 = sbr.rel (%p335) target = $region24
        $region23: #{tpu_custom_call.1} parent=11 // pred_region
          %s339 = ssub.s32 256, 256
          %340 = vsyncadd [#allocation9], %s339
          %s341 = sshll.u32 [#allocation10], 4
          %s342 = int_to_ptr.vmem [resolvable:$true] %s341
          %347 = dma.hbm_to_vmem [thread:$0]  %s6, 256, %s342, [#allocation9], 64, 64, 4
        $region24: #{tpu_custom_call.1} parent=11 // pred_fallthru
          _
        // Predicated region
        $region25: #{tpu_custom_call.1} parent=11 // pred_check
          %p348 = pneg %p215
        $region26: #{tpu_custom_call.1} parent=11 // pred_check_branch
          %350 = sbr.rel (%p348) target = $region28
        $region27: #{tpu_custom_call.1} parent=11 // pred_region
          _
        $region28: #{tpu_custom_call.1} parent=11 // pred_fallthru
          _
        // Predicated region
        $region29: #{tpu_custom_call.1} parent=11 // pred_check
          %p351 = pneg %p236
        $region30: #{tpu_custom_call.1} parent=11 // pred_check_branch
          %353 = sbr.rel (%p351) target = $region32
        $region31: #{tpu_custom_call.1} parent=11 // pred_region
          _
        $region32: #{tpu_custom_call.1} parent=11 // pred_fallthru
          _
        // Predicated region
        $region33: #{tpu_custom_call.1} parent=11 // pred_check
          %p354 = pneg %p257
        $region34: #{tpu_custom_call.1} parent=11 // pred_check_branch
          %356 = sbr.rel (%p354) target = $region36
        $region35: #{tpu_custom_call.1} parent=11 // pred_region
          _
        $region36: #{tpu_custom_call.1} parent=11 // pred_fallthru
          _
        // Predicated region
        $region37: #{tpu_custom_call.1} parent=11 // pred_check
          %p357 = pneg %p278
        $region38: #{tpu_custom_call.1} parent=11 // pred_check_branch
          %359 = sbr.rel (%p357) target = $region40
        $region39: #{tpu_custom_call.1} parent=11 // pred_region
          _
        $region40: #{tpu_custom_call.1} parent=11 // pred_fallthru
          _
      $region12: #{tpu_custom_call.1} parent=5 // pred_fallthru
        _
      %p360 = scmp.lt.s32.totalorder %s27, 2
      // Predicated region
      $region41: #{tpu_custom_call.1} parent=5 // pred_check
        %p361 = pneg %p360
      $region42: #{tpu_custom_call.1} parent=5 // pred_check_branch
        %363 = sbr.rel (%p361) target = $region44
      $region43: #{tpu_custom_call.1} parent=5 // pred_region
        // Predicated region
        $region45: #{tpu_custom_call.1} parent=43 // pred_check
          %p364 = pneg %p47
        $region46: #{tpu_custom_call.1} parent=43 // pred_check_branch
          %366 = sbr.rel (%p364) target = $region48
        $region47: #{tpu_custom_call.1} parent=43 // pred_region
          %p367 = scmp.lt.s32.totalorder %s27, 1
          %s368 = scalar_select %p367, %s27, 1
          %s369 = smul.addr %s368, 8
          %s370 = scalar_lea.vmem %s0, %s369
        $region48: #{tpu_custom_call.1} parent=43 // pred_fallthru
          _
        // Predicated region
        $region49: #{tpu_custom_call.1} parent=43 // pred_check
          %p371 = pneg %p73
        $region50: #{tpu_custom_call.1} parent=43 // pred_check_branch
          %373 = sbr.rel (%p371) target = $region52
        $region51: #{tpu_custom_call.1} parent=43 // pred_region
          %s374 = sand.u32 %s63, 1
          %s375 = scalar_lea.sflag [#allocation3], %s374
          %s376 = sand.u32 %s63, 1
          %s377 = smul.addr %s376, 8
          %s378 = scalar_lea.vmem [#allocation2], %s377
          %s380 = ssub.s32 128, 128
          %381 = vsyncadd %s375, %s380
          %s382 = smul.addr %s27, 128
          %s383 = scalar_lea.hbm %s1, %s382
          %s385 = sshll.u32 %s378, 4
          %s386 = int_to_ptr.vmem [resolvable:$true] %s385
          %388 = dma.hbm_to_vmem [thread:$0]  %s383, 128, %s386, %s375
        $region52: #{tpu_custom_call.1} parent=43 // pred_fallthru
          _
        // Predicated region
        $region53: #{tpu_custom_call.1} parent=43 // pred_check
          %p389 = pneg %p99
        $region54: #{tpu_custom_call.1} parent=43 // pred_check_branch
          %391 = sbr.rel (%p389) target = $region56
        $region55: #{tpu_custom_call.1} parent=43 // pred_region
          %s392 = sand.u32 %s27, 1
          %s393 = scalar_lea.sflag [#allocation6], %s392
          %s394 = sand.u32 %s89, 1
          %s395 = smul.addr %s394, 32
          %s396 = scalar_lea.vmem [#allocation5], %s395
          %s397 = smul.u32 8, %s27
          %s399 = ssub.s32 512, 512
          %400 = vsyncadd %s393, %s399
          %s401 = smul.addr %s397, 64
          %s402 = scalar_lea.hbm %s2, %s401
          %s403 = sshll.u32 %s396, 4
          %s404 = int_to_ptr.vmem [resolvable:$true] %s403
          %409 = dma.hbm_to_vmem [thread:$0]  %s402, 512, %s404, %s393, 64, 64, 4
        $region56: #{tpu_custom_call.1} parent=43 // pred_fallthru
          _
        // Predicated region
        $region57: #{tpu_custom_call.1} parent=43 // pred_check
          %p410 = pneg %p125
        $region58: #{tpu_custom_call.1} parent=43 // pred_check_branch
          %412 = sbr.rel (%p410) target = $region60
        $region59: #{tpu_custom_call.1} parent=43 // pred_region
          %s413 = sand.u32 %s27, 1
          %s414 = scalar_lea.sflag [#allocation6], %s413
          %s415 = sand.u32 %s115, 1
          %s416 = smul.addr %s415, 8
          %s417 = scalar_lea.vmem [#allocation7], %s416
          %s419 = ssub.s32 128, 128
          %420 = vsyncadd %s414, %s419
          %s421 = smul.addr %s27, 128
          %s422 = scalar_lea.hbm %s3, %s421
          %s424 = sshll.u32 %s417, 4
          %s425 = int_to_ptr.vmem [resolvable:$true] %s424
          %427 = dma.hbm_to_vmem [thread:$0]  %s422, 128, %s425, %s414
        $region60: #{tpu_custom_call.1} parent=43 // pred_fallthru
          _
      $region44: #{tpu_custom_call.1} parent=5 // pred_fallthru
        _
      %p428 = scmp.le.s32.totalorder 1, %s27
      %p429 = scmp.lt.s32.totalorder %s27, 3
      %p430 = pnand %p428, %p429
      %p431 = pneg %p430
      // Predicated region
      $region61: #{tpu_custom_call.1} parent=5 // pred_check
        _
      $region62: #{tpu_custom_call.1} parent=5 // pred_check_branch
        %433 = sbr.rel (%p430) target = $region64
      $region63: #{tpu_custom_call.1} parent=5 // pred_region
        %s434 = ssub.s32 %s27, 1
        %s435 = sand.u32 %s66, 1
        %s436 = scalar_lea.sflag [#allocation3], %s435
        %s437 = sand.u32 %s66, 1
        %s438 = smul.addr %s437, 8
        %s439 = scalar_lea.vmem [#allocation2], %s438
        // Predicated region
        $region65: #{tpu_custom_call.1} parent=63 // pred_check
          %p440 = pneg %p79
        $region66: #{tpu_custom_call.1} parent=63 // pred_check_branch
          %442 = sbr.rel (%p440) target = $region68
        $region67: #{tpu_custom_call.1} parent=63 // pred_region
          %443 = dma.done %s436, 128
        $region68: #{tpu_custom_call.1} parent=63 // pred_fallthru
          _
        %s444 = sand.u32 %s32, 1
        %s445 = scalar_lea.sflag [#allocation6], %s444
        %s446 = sand.u32 %s92, 1
        %s447 = smul.addr %s446, 32
        %s448 = scalar_lea.vmem [#allocation5], %s447
        // Predicated region
        $region69: #{tpu_custom_call.1} parent=63 // pred_check
          %p449 = pneg %p105
        $region70: #{tpu_custom_call.1} parent=63 // pred_check_branch
          %451 = sbr.rel (%p449) target = $region72
        $region71: #{tpu_custom_call.1} parent=63 // pred_region
          %452 = dma.done %s445, 512
        $region72: #{tpu_custom_call.1} parent=63 // pred_fallthru
          _
        %s453 = sand.u32 %s32, 1
        %s454 = scalar_lea.sflag [#allocation6], %s453
        %s455 = sand.u32 %s118, 1
        %s456 = smul.addr %s455, 8
        %s457 = scalar_lea.vmem [#allocation7], %s456
        // Predicated region
        $region73: #{tpu_custom_call.1} parent=63 // pred_check
          %p458 = pneg %p131
        $region74: #{tpu_custom_call.1} parent=63 // pred_check_branch
          %460 = sbr.rel (%p458) target = $region76
        $region75: #{tpu_custom_call.1} parent=63 // pred_region
          %461 = dma.done %s454, 128
        $region76: #{tpu_custom_call.1} parent=63 // pred_fallthru
          _
        // Predicated region
        $region77: #{tpu_custom_call.1} parent=63 // pred_check
          %p462 = pneg %p152
        $region78: #{tpu_custom_call.1} parent=63 // pred_check_branch
          %464 = sbr.rel (%p462) target = $region80
        $region79: #{tpu_custom_call.1} parent=63 // pred_region
          %465 = dma.done [#allocation9], 256
        $region80: #{tpu_custom_call.1} parent=63 // pred_fallthru
          _
        // Predicated region
        $region81: #{tpu_custom_call.1} parent=63 // pred_check
          %p466 = pneg %p194
        $region82: #{tpu_custom_call.1} parent=63 // pred_check_branch
          %468 = sbr.rel (%p466) target = $region84
        $region83: #{tpu_custom_call.1} parent=63 // pred_region
          %469 = dma.done [#allocation9], 256
        $region84: #{tpu_custom_call.1} parent=63 // pred_fallthru
          _
        %p470 = scmp.lt.s32.totalorder %s32, 1
        %s471 = scalar_select %p470, %s32, 1
        %s472 = smul.addr %s471, 8
        %s473 = scalar_lea.vmem %s0, %s472
        %p474 = pneg %p53
        %p475 = pneg %p50
        %s476 = sand.u32 %s66, 1
        %s477 = scalar_lea.sflag [#allocation3], %s476
        %s478 = sand.u32 %s66, 1
        %s479 = smul.addr %s478, 8
        %s480 = scalar_lea.vmem [#allocation2], %s479
        %p481 = pneg %p79
        %p482 = pneg %p76
        %s483 = sand.u32 %s32, 1
        %s484 = scalar_lea.sflag [#allocation6], %s483
        %s485 = sand.u32 %s92, 1
        %s486 = smul.addr %s485, 32
        %s487 = scalar_lea.vmem [#allocation5], %s486
        %p488 = pneg %p105
        %p489 = pneg %p102
        %s490 = sand.u32 %s32, 1
        %s491 = scalar_lea.sflag [#allocation6], %s490
        %s492 = sand.u32 %s118, 1
        %s493 = smul.addr %s492, 8
        %s494 = scalar_lea.vmem [#allocation7], %s493
        %p495 = pneg %p131
        %p496 = pneg %p128
        %p497 = pneg %p152
        %p498 = pneg %p149
        %p499 = pneg %p173
        %p500 = pneg %p170
        %p501 = pneg %p194
        %p502 = pneg %p191
        %p503 = pneg %p215
        %p504 = pneg %p212
        %p505 = pneg %p236
        %p506 = pneg %p233
        %p507 = pneg %p257
        %p508 = pneg %p254
        %p509 = pneg %p278
        %p510 = pneg %p275
        %p511 = pneg %p304
        %p512 = pneg %p301
        %s513 = sand.u32 %s291, 1
        %s514 = scalar_lea.sflag [#allocation4], %s513
        %s515 = sand.u32 %s291, 1
        %s516 = smul.addr %s515, 32
        %s517 = scalar_lea.vmem [#allocation11], %s516
        %p518 = scmp.lt.s32.totalorder %s32, 1
        %s519 = scalar_select %p518, %s32, 1
        %s520 = smul.addr %s519, 8
        %s521 = scalar_lea.vmem %s0, %s520
        %s522 = smul.u32 8, %s32
        %v524 = vld [vmem:[%s448] sm:$0xf]
        %v525 = vld [vmem:[%s448 + $0x4] sm:$0xf]
        %v526 = vld [vmem:[%s448 + $0x8] sm:$0xf]
        %v527 = vld [vmem:[%s448 + $0xc] sm:$0xf]
        %v528 = vld [vmem:[%s448 + $0x10] sm:$0xf]
        %v529 = vld [vmem:[%s448 + $0x14] sm:$0xf]
        %v530 = vld [vmem:[%s448 + $0x18] sm:$0xf]
        %v531 = vld [vmem:[%s448 + $0x1c] sm:$0xf]
        %v532 = vld [vmem:[%s521] sm:$0xff]
        %v533 = vld [vmem:[%s439] sm:$0xff]
        %v534 = vpack.c.bf16 %v532, %v532
        %v535 = vld [vmem:[#allocation10] sm:$0xf]
        %v536 = vld [vmem:[#allocation10 + $0x4] sm:$0xf]
        %v537 = vld [vmem:[#allocation10 + $0x8] sm:$0xf]
        %v538 = vld [vmem:[#allocation10 + $0xc] sm:$0xf]
        %v547 = vunpack.c.l.b16 %v524
        %v548 = vunpack.c.l.b16 %v525
        %v549 = vunpack.c.l.b16 %v526
        %v550 = vunpack.c.l.b16 %v527
        %v551 = vunpack.c.l.b16 %v528
        %v552 = vunpack.c.l.b16 %v529
        %v553 = vunpack.c.l.b16 %v530
        %v554 = vunpack.c.l.b16 %v531
        %v555 = vpack.c.b16 %v548, %v547
        %v556 = vpack.c.b16 %v550, %v549
        %v557 = vpack.c.b16 %v552, %v551
        %v558 = vpack.c.b16 %v554, %v553
        %v563 = vunpack.c.l.b16 %v535
        %v564 = vunpack.c.l.b16 %v536
        %v565 = vunpack.c.l.b16 %v537
        %v566 = vunpack.c.l.b16 %v538
        %v567 = vpack.c.b16 %v564, %v563
        %v568 = vpack.c.b16 %v566, %v565
        %vm571 = vcmask 261120
        %v573 = vsel %vm571, %v555, 0
        %v576 = vsel %vm571, %v556, 0
        %v579 = vsel %vm571, %v557, 0
        %v582 = vsel %vm571, %v558, 0
        %584 = vmatprep.subr.bf16.mxu0 0
        %585 = vmatpush1.bf16.msra.mxu0 %v567
        %586 = vmatprep.subr.bf16.mxu0 0
        %587 = vmatpush1.bf16.msra.mxu0 %v568
        %588 = vmatprep.subr.bf16.mxu0 0
        %589 = vmatpush1.bf16.msra.mxu0 0
        %590 = vmatprep.subr.bf16.mxu0 0
        %591 = vmatpush1.bf16.msra.mxu0 0
        %592 = vmatprep.subr.bf16.mxu0 0
        %593 = vmatpush1.bf16.msra.mxu0 0
        %594 = vmatprep.subr.bf16.mxu0 0
        %595 = vmatpush1.bf16.msra.mxu0 0
        %596 = vmatprep.subr.bf16.mxu0 0
        %597 = vmatpush1.bf16.msra.mxu0 0
        %598 = vmatprep.subr.bf16.mxu0 0
        %599 = vmatpush1.bf16.msra.mxu0 0
        %600 = vmatprep.subr.bf16.mxu0 0
        %601 = vmatpush1.bf16.msra.mxu0 0
        %602 = vmatprep.subr.bf16.mxu0 0
        %603 = vmatpush1.bf16.msra.mxu0 0
        %604 = vmatprep.subr.bf16.mxu0 0
        %605 = vmatpush1.bf16.msra.mxu0 0
        %606 = vmatprep.subr.bf16.mxu0 0
        %607 = vmatpush1.bf16.msra.mxu0 0
        %608 = vmatprep.subr.bf16.mxu0 0
        %609 = vmatpush1.bf16.msra.mxu0 0
        %610 = vmatprep.subr.bf16.mxu0 0
        %611 = vmatpush1.bf16.msra.mxu0 0
        %612 = vmatprep.subr.bf16.mxu0 0
        %613 = vmatpush1.bf16.msra.mxu0 0
        %614 = vmatprep.subr.bf16.mxu0 0
        %615 = vmatpush1.bf16.msra.mxu0 0
        %616 = vmatprep.mubr.bf16.mxu0 0
        %617 = vmatmul.mubr.bf16.gmra.mrb[0].mxu0 %v573
        %v618 = vpop.f32.mrb[0].mxu0
        %v619 = vadd.f32 0.0, %v618
        %v620 = vpop.f32.mrb[0].mxu0
        %v621 = vpop.f32.mrb[0].mxu0
        %v622 = vadd.f32 0.0, %v621
        %v623 = vpop.f32.mrb[0].mxu0
        %624 = vmatprep.mubr.bf16.mxu0 0
        %625 = vmatmul.mubr.bf16.gmra.mrb[0].mxu0 %v576
        %v626 = vpop.f32.mrb[0].mxu0
        %v627 = vadd.f32 0.0, %v626
        %v628 = vpop.f32.mrb[0].mxu0
        %v629 = vpop.f32.mrb[0].mxu0
        %v630 = vadd.f32 0.0, %v629
        %v631 = vpop.f32.mrb[0].mxu0
        %632 = vmatprep.mubr.bf16.mxu0 0
        %633 = vmatmul.mubr.bf16.gmra.mrb[0].mxu0 %v579
        %v634 = vpop.f32.mrb[0].mxu0
        %v635 = vadd.f32 0.0, %v634
        %v636 = vpop.f32.mrb[0].mxu0
        %v637 = vpop.f32.mrb[0].mxu0
        %v638 = vadd.f32 0.0, %v637
        %v639 = vpop.f32.mrb[0].mxu0
        %640 = vmatprep.mubr.bf16.mxu0 0
        %641 = vmatmul.mubr.bf16.gmra.mrb[0].mxu0 %v582
        %v642 = vpop.f32.mrb[0].mxu0
        %v643 = vadd.f32 0.0, %v642
        %v644 = vpop.f32.mrb[0].mxu0
        %v645 = vpop.f32.mrb[0].mxu0
        %v646 = vadd.f32 0.0, %v645
        %v647 = vpop.f32.mrb[0].mxu0
        %648 = vdwg.mxu0
        %v649 = vld [vmem:[#allocation8] sm:$0xf]
        %v650 = vld [vmem:[#allocation8 + $0x4] sm:$0xf]
        %v651 = vld [vmem:[#allocation8 + $0x8] sm:$0xf]
        %v652 = vld [vmem:[#allocation8 + $0xc] sm:$0xf]
        %v653 = vld [vmem:[%s5] sm:$0x1]
        %v655 = vlaneseq
        %v656 = vshrl.u32 %v655, 7
        %v657 = vsub.s32 0, %v656
        %v658 = vrot.slane %v653, %v657
        %v664 = vunpack.c.l.b16 %v649
        %v665 = vunpack.c.l.b16 %v650
        %v666 = vunpack.c.l.b16 %v651
        %v667 = vunpack.c.l.b16 %v652
        %v668 = vpack.c.b16 %v665, %v664
        %v669 = vpack.c.b16 %v667, %v666
        %v673 = vsel %vm571, %v534, 0
        %675 = vmatprep.subr.bf16.mxu0 0
        %676 = vmatpush1.bf16.msra.mxu0 %v668
        %677 = vmatprep.subr.bf16.mxu0 0
        %678 = vmatpush1.bf16.msra.mxu0 %v669
        %679 = vmatprep.subr.bf16.mxu0 0
        %680 = vmatpush1.bf16.msra.mxu0 0
        %681 = vmatprep.subr.bf16.mxu0 0
        %682 = vmatpush1.bf16.msra.mxu0 0
        %683 = vmatprep.subr.bf16.mxu0 0
        %684 = vmatpush1.bf16.msra.mxu0 0
        %685 = vmatprep.subr.bf16.mxu0 0
        %686 = vmatpush1.bf16.msra.mxu0 0
        %687 = vmatprep.subr.bf16.mxu0 0
        %688 = vmatpush1.bf16.msra.mxu0 0
        %689 = vmatprep.subr.bf16.mxu0 0
        %690 = vmatpush1.bf16.msra.mxu0 0
        %691 = vmatprep.subr.bf16.mxu0 0
        %692 = vmatpush1.bf16.msra.mxu0 0
        %693 = vmatprep.subr.bf16.mxu0 0
        %694 = vmatpush1.bf16.msra.mxu0 0
        %695 = vmatprep.subr.bf16.mxu0 0
        %696 = vmatpush1.bf16.msra.mxu0 0
        %697 = vmatprep.subr.bf16.mxu0 0
        %698 = vmatpush1.bf16.msra.mxu0 0
        %699 = vmatprep.subr.bf16.mxu0 0
        %700 = vmatpush1.bf16.msra.mxu0 0
        %701 = vmatprep.subr.bf16.mxu0 0
        %702 = vmatpush1.bf16.msra.mxu0 0
        %703 = vmatprep.subr.bf16.mxu0 0
        %704 = vmatpush1.bf16.msra.mxu0 0
        %705 = vmatprep.subr.bf16.mxu0 0
        %706 = vmatpush1.bf16.msra.mxu0 0
        %707 = vmatprep.mubr.bf16.mxu0 0
        %708 = vmatmul.mubr.bf16.gmra.mrb[0].mxu0 %v673
        %v709 = vpop.f32.mrb[0].mxu0
        %v710 = vadd.f32 %v658, %v709
        %v711 = vpop.f32.mrb[0].mxu0
        %v712 = vpop.f32.mrb[0].mxu0
        %v713 = vpop.f32.mrb[0].mxu0
        %714 = vdwg.mxu0
        %v716 = vcombine.high %v710, %v710
        %v718 = vunpack.c.l.s4 1966171168
        %v719 = vunpack.c.0.s8 %v718
        %v720 = vlaneseq
        %v721 = vshrl.u32 %v720, 7
        %v722 = vsub.s32 %v719, %v721
        %v723 = vrot.slane %v710, %v722
        %v725 = vunpack.c.l.s4 1966171168
        %v726 = vunpack.c.0.s8 %v725
        %v727 = vlaneseq
        %v728 = vshrl.u32 %v727, 7
        %v729 = vsub.s32 %v726, %v728
        %v730 = vrot.slane %v716, %v729
        %v731 = vcombine.high %v723, %v723
        %v732 = vcombine.high %v730, %v730
        %v734 = vunpack.c.l.s4 1966171168
        %v735 = vunpack.c.0.s8 %v734
        %v736 = vlaneseq
        %v737 = vshrl.u32 %v736, 7
        %v738 = vsub.s32 %v735, %v737
        %v739 = vrot.slane %v723, %v738
        %v741 = vunpack.c.l.s4 1966171168
        %v742 = vunpack.c.0.s8 %v741
        %v743 = vlaneseq
        %v744 = vshrl.u32 %v743, 7
        %v745 = vsub.s32 %v742, %v744
        %v746 = vrot.slane %v730, %v745
        %v748 = vunpack.c.l.s4 1966171168
        %v749 = vunpack.c.0.s8 %v748
        %v750 = vlaneseq
        %v751 = vshrl.u32 %v750, 7
        %v752 = vsub.s32 %v749, %v751
        %v753 = vrot.slane %v731, %v752
        %v755 = vunpack.c.l.s4 1966171168
        %v756 = vunpack.c.0.s8 %v755
        %v757 = vlaneseq
        %v758 = vshrl.u32 %v757, 7
        %v759 = vsub.s32 %v756, %v758
        %v760 = vrot.slane %v732, %v759
        %v761 = vcombine.high %v739, %v739
        %v762 = vcombine.high %v746, %v746
        %v763 = vcombine.high %v753, %v753
        %v764 = vcombine.high %v760, %v760
        %v765 = vlaneseq
        %v766 = vshrl.u32 %v765, 7
        %v767 = vsub.s32 0, %v766
        %v768 = vrot.slane %v739, %v767
        %v769 = vlaneseq
        %v770 = vshrl.u32 %v769, 7
        %v771 = vsub.s32 0, %v770
        %v772 = vrot.slane %v753, %v771
        %v773 = vlaneseq
        %v774 = vshrl.u32 %v773, 7
        %v775 = vsub.s32 0, %v774
        %v776 = vrot.slane %v761, %v775
        %v777 = vlaneseq
        %v778 = vshrl.u32 %v777, 7
        %v779 = vsub.s32 0, %v778
        %v780 = vrot.slane %v763, %v779
        %v781 = vlaneseq
        %v782 = vshrl.u32 %v781, 7
        %v783 = vsub.s32 0, %v782
        %v784 = vrot.slane %v746, %v783
        %v785 = vlaneseq
        %v786 = vshrl.u32 %v785, 7
        %v787 = vsub.s32 0, %v786
        %v788 = vrot.slane %v760, %v787
        %v789 = vlaneseq
        %v790 = vshrl.u32 %v789, 7
        %v791 = vsub.s32 0, %v790
        %v792 = vrot.slane %v762, %v791
        %v793 = vlaneseq
        %v794 = vshrl.u32 %v793, 7
        %v795 = vsub.s32 0, %v794
        %v796 = vrot.slane %v764, %v795
        %v805 = vadd.f32 %v768, %v619
        %v806 = vadd.f32 %v772, %v622
        %v807 = vadd.f32 %v776, %v627
        %v808 = vadd.f32 %v780, %v630
        %v809 = vadd.f32 %v784, %v635
        %v810 = vadd.f32 %v788, %v638
        %v811 = vadd.f32 %v792, %v643
        %v812 = vadd.f32 %v796, %v646
        %v813 = vtanh.pop %v805
        %v814 = vtanh.pop %v806
        %v815 = vtanh.pop %v807
        %v816 = vtanh.pop %v808
        %v817 = vtanh.pop %v809
        %v818 = vtanh.pop %v810
        %v819 = vtanh.pop %v811
        %v820 = vtanh.pop %v812
        %v821 = vld [vmem:[%s7] sm:$0x1]
        %v823 = vlaneseq
        %v824 = vshrl.u32 %v823, 7
        %v825 = vsub.s32 0, %v824
        %v826 = vrot.slane %v821, %v825
        %v828 = vmul.f32 %v813, %v826
        %v829 = vmul.f32 %v814, %v826
        %v830 = vmul.f32 %v815, %v826
        %v831 = vmul.f32 %v816, %v826
        %v832 = vmul.f32 %v817, %v826
        %v833 = vmul.f32 %v818, %v826
        %v834 = vmul.f32 %v819, %v826
        %v835 = vmul.f32 %v820, %v826
        %v836 = vsel %vm571, %v828, 0.0
        %837 = vadd.xlane.f32.xlu0 %v836
        %v838 = vpop.xlane.xlu0 %837
        %v839 = vsel %vm571, %v829, 0.0
        %840 = vadd.xlane.f32.xlu0 %v839
        %v841 = vpop.xlane.xlu0 %840
        %v842 = vsel %vm571, %v830, 0.0
        %843 = vadd.xlane.f32.xlu0 %v842
        %v844 = vpop.xlane.xlu0 %843
        %v845 = vsel %vm571, %v831, 0.0
        %846 = vadd.xlane.f32.xlu0 %v845
        %v847 = vpop.xlane.xlu0 %846
        %v848 = vsel %vm571, %v832, 0.0
        %849 = vadd.xlane.f32.xlu0 %v848
        %v850 = vpop.xlane.xlu0 %849
        %v851 = vsel %vm571, %v833, 0.0
        %852 = vadd.xlane.f32.xlu0 %v851
        %v853 = vpop.xlane.xlu0 %852
        %v854 = vsel %vm571, %v834, 0.0
        %855 = vadd.xlane.f32.xlu0 %v854
        %v856 = vpop.xlane.xlu0 %855
        %v857 = vsel %vm571, %v835, 0.0
        %858 = vadd.xlane.f32.xlu0 %v857
        %v859 = vpop.xlane.xlu0 %858
        %v868 = vlaneseq
        %v869 = vand.u32 %v868, 127
        %v870 = vlaneseq
        %v871 = vshrl.u32 %v870, 7
        %v872 = vsub.s32 %v869, %v871
        %v873 = vrot.slane %v838, %v872
        %v874 = vlaneseq
        %v875 = vshrl.u32 %v874, 7
        %v876 = vsub.s32 %v869, %v875
        %v877 = vrot.slane %v841, %v876
        %v878 = vlaneseq
        %v879 = vshrl.u32 %v878, 7
        %v880 = vsub.s32 %v869, %v879
        %v881 = vrot.slane %v844, %v880
        %v882 = vlaneseq
        %v883 = vshrl.u32 %v882, 7
        %v884 = vsub.s32 %v869, %v883
        %v885 = vrot.slane %v847, %v884
        %v886 = vlaneseq
        %v887 = vshrl.u32 %v886, 7
        %v888 = vsub.s32 %v869, %v887
        %v889 = vrot.slane %v850, %v888
        %v890 = vlaneseq
        %v891 = vshrl.u32 %v890, 7
        %v892 = vsub.s32 %v869, %v891
        %v893 = vrot.slane %v853, %v892
        %v894 = vlaneseq
        %v895 = vshrl.u32 %v894, 7
        %v896 = vsub.s32 %v869, %v895
        %v897 = vrot.slane %v856, %v896
        %v898 = vlaneseq
        %v899 = vshrl.u32 %v898, 7
        %v900 = vsub.s32 %v869, %v899
        %v901 = vrot.slane %v859, %v900
        %vm902 = vcmask 1041409
        %v903 = vsel %vm902, %v877, %v873
        %vm904 = vcmask 1042434
        %v905 = vsel %vm904, %v881, %v903
        %vm906 = vcmask 1043459
        %v907 = vsel %vm906, %v885, %v905
        %vm908 = vcmask 1044484
        %v909 = vsel %vm908, %v889, %v907
        %vm910 = vcmask 1045509
        %v911 = vsel %vm910, %v893, %v909
        %vm912 = vcmask 1046534
        %v913 = vsel %vm912, %v897, %v911
        %vm914 = vcmask 1047559
        %v915 = vsel %vm914, %v901, %v913
        %vm917 = vcmask 64512
        %v918 = vsel %vm917, %v915, -inf
        %919 = vmax.xlane.f32.xlu0 %v918
        %v920 = vpop.xlane.xlu0 %919
        %v922 = vlaneseq
        %v923 = vshrl.u32 %v922, 7
        %v924 = vsub.s32 0, %v923
        %v925 = vrot.slane %v920, %v924
        %v926 = vlaneseq
        %v927 = vshrl.u32 %v926, 7
        %v928 = vsub.s32 1, %v927
        %v929 = vrot.slane %v920, %v928
        %v930 = vlaneseq
        %v931 = vshrl.u32 %v930, 7
        %v932 = vsub.s32 2, %v931
        %v933 = vrot.slane %v920, %v932
        %v934 = vlaneseq
        %v935 = vshrl.u32 %v934, 7
        %v936 = vsub.s32 3, %v935
        %v937 = vrot.slane %v920, %v936
        %v938 = vlaneseq
        %v939 = vshrl.u32 %v938, 7
        %v940 = vsub.s32 4, %v939
        %v941 = vrot.slane %v920, %v940
        %v942 = vlaneseq
        %v943 = vshrl.u32 %v942, 7
        %v944 = vsub.s32 5, %v943
        %v945 = vrot.slane %v920, %v944
        %v946 = vlaneseq
        %v947 = vshrl.u32 %v946, 7
        %v948 = vsub.s32 6, %v947
        %v949 = vrot.slane %v920, %v948
        %v950 = vlaneseq
        %v951 = vshrl.u32 %v950, 7
        %v952 = vsub.s32 7, %v951
        %v953 = vrot.slane %v920, %v952
        %v962 = vsub.f32 %v838, %v925
        %v963 = vsub.f32 %v841, %v929
        %v964 = vsub.f32 %v844, %v933
        %v965 = vsub.f32 %v847, %v937
        %v966 = vsub.f32 %v850, %v941
        %v967 = vsub.f32 %v853, %v945
        %v968 = vsub.f32 %v856, %v949
        %v969 = vsub.f32 %v859, %v953
        %v970 = vmul.f32 %v962, 1.442695
        %v971 = vpow.pop %v970
        %v972 = vmul.f32 %v963, 1.442695
        %v973 = vpow.pop %v972
        %v974 = vmul.f32 %v964, 1.442695
        %v975 = vpow.pop %v974
        %v976 = vmul.f32 %v965, 1.442695
        %v977 = vpow.pop %v976
        %v978 = vmul.f32 %v966, 1.442695
        %v979 = vpow.pop %v978
        %v980 = vmul.f32 %v967, 1.442695
        %v981 = vpow.pop %v980
        %v982 = vmul.f32 %v968, 1.442695
        %v983 = vpow.pop %v982
        %v984 = vmul.f32 %v969, 1.442695
        %v985 = vpow.pop %v984
        %994 = vset.pattern.permute.xlu0 0
        %995 = vperm.xlu0 %994, %v971
        %v996 = vpop.permute.xlu0 %995
        %997 = vset.pattern.permute.xlu0 0
        %998 = vperm.xlu0 %997, %v973
        %v999 = vpop.permute.xlu0 %998
        %1000 = vset.pattern.permute.xlu0 0
        %1001 = vperm.xlu0 %1000, %v975
        %v1002 = vpop.permute.xlu0 %1001
        %1003 = vset.pattern.permute.xlu0 0
        %1004 = vperm.xlu0 %1003, %v977
        %v1005 = vpop.permute.xlu0 %1004
        %1006 = vset.pattern.permute.xlu0 0
        %1007 = vperm.xlu0 %1006, %v979
        %v1008 = vpop.permute.xlu0 %1007
        %1009 = vset.pattern.permute.xlu0 0
        %1010 = vperm.xlu0 %1009, %v981
        %v1011 = vpop.permute.xlu0 %1010
        %1012 = vset.pattern.permute.xlu0 0
        %1013 = vperm.xlu0 %1012, %v983
        %v1014 = vpop.permute.xlu0 %1013
        %1015 = vset.pattern.permute.xlu0 0
        %1016 = vperm.xlu0 %1015, %v985
        %v1017 = vpop.permute.xlu0 %1016
        %v1018 = vlaneseq
        %v1019 = vshrl.u32 %v1018, 7
        %v1020 = vsub.s32 %v869, %v1019
        %v1021 = vrot.slane %v996, %v1020
        %v1022 = vlaneseq
        %v1023 = vshrl.u32 %v1022, 7
        %v1024 = vsub.s32 %v869, %v1023
        %v1025 = vrot.slane %v999, %v1024
        %v1026 = vlaneseq
        %v1027 = vshrl.u32 %v1026, 7
        %v1028 = vsub.s32 %v869, %v1027
        %v1029 = vrot.slane %v1002, %v1028
        %v1030 = vlaneseq
        %v1031 = vshrl.u32 %v1030, 7
        %v1032 = vsub.s32 %v869, %v1031
        %v1033 = vrot.slane %v1005, %v1032
        %v1034 = vlaneseq
        %v1035 = vshrl.u32 %v1034, 7
        %v1036 = vsub.s32 %v869, %v1035
        %v1037 = vrot.slane %v1008, %v1036
        %v1038 = vlaneseq
        %v1039 = vshrl.u32 %v1038, 7
        %v1040 = vsub.s32 %v869, %v1039
        %v1041 = vrot.slane %v1011, %v1040
        %v1042 = vlaneseq
        %v1043 = vshrl.u32 %v1042, 7
        %v1044 = vsub.s32 %v869, %v1043
        %v1045 = vrot.slane %v1014, %v1044
        %v1046 = vlaneseq
        %v1047 = vshrl.u32 %v1046, 7
        %v1048 = vsub.s32 %v869, %v1047
        %v1049 = vrot.slane %v1017, %v1048
        %v1050 = vsel %vm902, %v1025, %v1021
        %v1051 = vsel %vm904, %v1029, %v1050
        %v1052 = vsel %vm906, %v1033, %v1051
        %v1053 = vsel %vm908, %v1037, %v1052
        %v1054 = vsel %vm910, %v1041, %v1053
        %v1055 = vsel %vm912, %v1045, %v1054
        %v1056 = vsel %vm914, %v1049, %v1055
        %v1058 = vsel %vm917, %v1056, 0.0
        %1059 = vadd.xlane.f32.xlu0 %v1058
        %v1060 = vpop.xlane.xlu0 %1059
        %v1061 = vrcp.pop %v1060
        %v1063 = vlaneseq
        %v1064 = vshrl.u32 %v1063, 7
        %v1065 = vsub.s32 0, %v1064
        %v1066 = vrot.slane %v1061, %v1065
        %v1067 = vlaneseq
        %v1068 = vshrl.u32 %v1067, 7
        %v1069 = vsub.s32 1, %v1068
        %v1070 = vrot.slane %v1061, %v1069
        %v1071 = vlaneseq
        %v1072 = vshrl.u32 %v1071, 7
        %v1073 = vsub.s32 2, %v1072
        %v1074 = vrot.slane %v1061, %v1073
        %v1075 = vlaneseq
        %v1076 = vshrl.u32 %v1075, 7
        %v1077 = vsub.s32 3, %v1076
        %v1078 = vrot.slane %v1061, %v1077
        %v1079 = vlaneseq
        %v1080 = vshrl.u32 %v1079, 7
        %v1081 = vsub.s32 4, %v1080
        %v1082 = vrot.slane %v1061, %v1081
        %v1083 = vlaneseq
        %v1084 = vshrl.u32 %v1083, 7
        %v1085 = vsub.s32 5, %v1084
        %v1086 = vrot.slane %v1061, %v1085
        %v1087 = vlaneseq
        %v1088 = vshrl.u32 %v1087, 7
        %v1089 = vsub.s32 6, %v1088
        %v1090 = vrot.slane %v1061, %v1089
        %v1091 = vlaneseq
        %v1092 = vshrl.u32 %v1091, 7
        %v1093 = vsub.s32 7, %v1092
        %v1094 = vrot.slane %v1061, %v1093
        %v1103 = vmul.f32 %v971, %v1066
        %v1104 = vmul.f32 %v973, %v1070
        %v1105 = vmul.f32 %v975, %v1074
        %v1106 = vmul.f32 %v977, %v1078
        %v1107 = vmul.f32 %v979, %v1082
        %v1108 = vmul.f32 %v981, %v1086
        %v1109 = vmul.f32 %v983, %v1090
        %v1110 = vmul.f32 %v985, %v1094
        %v1111 = vunpack.c.l.bf16 %v524
        %v1112 = vunpack.c.l.bf16 %v525
        %v1113 = vunpack.c.l.bf16 %v526
        %v1114 = vunpack.c.l.bf16 %v527
        %v1115 = vunpack.c.l.bf16 %v528
        %v1116 = vunpack.c.l.bf16 %v529
        %v1117 = vunpack.c.l.bf16 %v530
        %v1118 = vunpack.c.l.bf16 %v531
        %1120 = vset.pattern.permute.xlu0 0
        %1121 = vperm.xlu0 %1120, %v1103
        %v1122 = vpop.permute.xlu0 %1121
        %1125 = vset.pattern.permute.xlu0 0
        %1126 = vperm.xlu0 %1125, %v1104
        %v1127 = vpop.permute.xlu0 %1126
        %1130 = vset.pattern.permute.xlu0 0
        %1131 = vperm.xlu0 %1130, %v1105
        %v1132 = vpop.permute.xlu0 %1131
        %1135 = vset.pattern.permute.xlu0 0
        %1136 = vperm.xlu0 %1135, %v1106
        %v1137 = vpop.permute.xlu0 %1136
        %1140 = vset.pattern.permute.xlu0 0
        %1141 = vperm.xlu0 %1140, %v1107
        %v1142 = vpop.permute.xlu0 %1141
        %1145 = vset.pattern.permute.xlu0 0
        %1146 = vperm.xlu0 %1145, %v1108
        %v1147 = vpop.permute.xlu0 %1146
        %1150 = vset.pattern.permute.xlu0 0
        %1151 = vperm.xlu0 %1150, %v1109
        %v1152 = vpop.permute.xlu0 %1151
        %1155 = vset.pattern.permute.xlu0 0
        %1156 = vperm.xlu0 %1155, %v1110
        %v1157 = vpop.permute.xlu0 %1156
        %v1159 = vmul.f32 %v1122, %v1111
        %v1160 = vmul.f32 %v1127, %v1112
        %v1161 = vmul.f32 %v1132, %v1113
        %v1162 = vmul.f32 %v1137, %v1114
        %v1163 = vmul.f32 %v1142, %v1115
        %v1164 = vmul.f32 %v1147, %v1116
        %v1165 = vmul.f32 %v1152, %v1117
        %v1166 = vmul.f32 %v1157, %v1118
        %v1167 = vsel %vm571, %v1159, 0.0
        %v1168 = vrot.slane %v1167, 4
        %v1169 = vadd.f32 %v1167, %v1168
        %v1170 = vrot.slane %v1169, 2
        %v1171 = vadd.f32 %v1169, %v1170
        %v1172 = vrot.slane %v1171, 1
        %v1173 = vadd.f32 %v1171, %v1172
        %v1174 = vsel %vm571, %v1160, 0.0
        %v1175 = vrot.slane %v1174, 4
        %v1176 = vadd.f32 %v1174, %v1175
        %v1177 = vrot.slane %v1176, 2
        %v1178 = vadd.f32 %v1176, %v1177
        %v1179 = vrot.slane %v1178, 1
        %v1180 = vadd.f32 %v1178, %v1179
        %v1181 = vsel %vm571, %v1161, 0.0
        %v1182 = vrot.slane %v1181, 4
        %v1183 = vadd.f32 %v1181, %v1182
        %v1184 = vrot.slane %v1183, 2
        %v1185 = vadd.f32 %v1183, %v1184
        %v1186 = vrot.slane %v1185, 1
        %v1187 = vadd.f32 %v1185, %v1186
        %v1188 = vsel %vm571, %v1162, 0.0
        %v1189 = vrot.slane %v1188, 4
        %v1190 = vadd.f32 %v1188, %v1189
        %v1191 = vrot.slane %v1190, 2
        %v1192 = vadd.f32 %v1190, %v1191
        %v1193 = vrot.slane %v1192, 1
        %v1194 = vadd.f32 %v1192, %v1193
        %v1195 = vsel %vm571, %v1163, 0.0
        %v1196 = vrot.slane %v1195, 4
        %v1197 = vadd.f32 %v1195, %v1196
        %v1198 = vrot.slane %v1197, 2
        %v1199 = vadd.f32 %v1197, %v1198
        %v1200 = vrot.slane %v1199, 1
        %v1201 = vadd.f32 %v1199, %v1200
        %v1202 = vsel %vm571, %v1164, 0.0
        %v1203 = vrot.slane %v1202, 4
        %v1204 = vadd.f32 %v1202, %v1203
        %v1205 = vrot.slane %v1204, 2
        %v1206 = vadd.f32 %v1204, %v1205
        %v1207 = vrot.slane %v1206, 1
        %v1208 = vadd.f32 %v1206, %v1207
        %v1209 = vsel %vm571, %v1165, 0.0
        %v1210 = vrot.slane %v1209, 4
        %v1211 = vadd.f32 %v1209, %v1210
        %v1212 = vrot.slane %v1211, 2
        %v1213 = vadd.f32 %v1211, %v1212
        %v1214 = vrot.slane %v1213, 1
        %v1215 = vadd.f32 %v1213, %v1214
        %v1216 = vsel %vm571, %v1166, 0.0
        %v1217 = vrot.slane %v1216, 4
        %v1218 = vadd.f32 %v1216, %v1217
        %v1219 = vrot.slane %v1218, 2
        %v1220 = vadd.f32 %v1218, %v1219
        %v1221 = vrot.slane %v1220, 1
        %v1222 = vadd.f32 %v1220, %v1221
        %v1223 = vpack.c.bf16 %v1173, %v1173
        %v1224 = vpack.c.bf16 %v1180, %v1180
        %v1225 = vpack.c.bf16 %v1187, %v1187
        %v1226 = vpack.c.bf16 %v1194, %v1194
        %v1227 = vpack.c.bf16 %v1201, %v1201
        %v1228 = vpack.c.bf16 %v1208, %v1208
        %v1229 = vpack.c.bf16 %v1215, %v1215
        %v1230 = vpack.c.bf16 %v1222, %v1222
        %v1239 = vunpack.c.l.b16 %v1223
        %v1240 = vunpack.c.l.b16 %v1224
        %v1241 = vunpack.c.l.b16 %v1225
        %v1242 = vunpack.c.l.b16 %v1226
        %v1243 = vunpack.c.l.b16 %v1227
        %v1244 = vunpack.c.l.b16 %v1228
        %v1245 = vunpack.c.l.b16 %v1229
        %v1246 = vunpack.c.l.b16 %v1230
        %v1247 = vsel %vm902, %v1240, %v1239
        %v1248 = vsel %vm904, %v1241, %v1247
        %v1249 = vsel %vm906, %v1242, %v1248
        %v1250 = vsel %vm908, %v1243, %v1249
        %v1251 = vsel %vm910, %v1244, %v1250
        %v1252 = vsel %vm912, %v1245, %v1251
        %v1253 = vsel %vm914, %v1246, %v1252
        %v1254 = vpack.c.b16 %v1253, %v1253
        %1256 = vrot.lane.b32.xlu0 %v534, 32
        %v1257 = vpop.permute.xlu0 %1256
        %v1260 = vsel %vm571, %v1254, %v1257
        %v1261 = vld [vmem:[%s457] sm:$0xff]
        %v1262 = vld [vmem:[%s8] sm:$0xf]
        %v1263 = vld [vmem:[%s8 + $0x4] sm:$0xf]
        %v1264 = vld [vmem:[%s8 + $0x8] sm:$0xf]
        %v1265 = vld [vmem:[%s8 + $0xc] sm:$0xf]
        %v1266 = vld [vmem:[%s8 + $0x10] sm:$0xf]
        %v1267 = vld [vmem:[%s8 + $0x14] sm:$0xf]
        %v1268 = vld [vmem:[%s8 + $0x18] sm:$0xf]
        %v1269 = vld [vmem:[%s8 + $0x1c] sm:$0xf]
        %v1278 = vunpack.c.l.b16 %v1262
        %v1279 = vunpack.c.l.b16 %v1263
        %v1280 = vunpack.c.l.b16 %v1264
        %v1281 = vunpack.c.l.b16 %v1265
        %v1282 = vunpack.c.l.b16 %v1266
        %v1283 = vunpack.c.l.b16 %v1267
        %v1284 = vunpack.c.l.b16 %v1268
        %v1285 = vunpack.c.l.b16 %v1269
        %v1286 = vpack.c.b16 %v1279, %v1278
        %v1287 = vpack.c.b16 %v1281, %v1280
        %v1288 = vpack.c.b16 %v1283, %v1282
        %v1289 = vpack.c.b16 %v1285, %v1284
        %vm1294 = vcmask 523264
        %v1295 = vsel %vm1294, %v1260, 0
        %1297 = vmatprep.subr.bf16.mxu0 0
        %1298 = vmatpush1.bf16.msra.mxu0 %v1286
        %1299 = vmatprep.subr.bf16.mxu0 0
        %1300 = vmatpush1.bf16.msra.mxu0 %v1287
        %1301 = vmatprep.subr.bf16.mxu0 0
        %1302 = vmatpush1.bf16.msra.mxu0 %v1288
        %1303 = vmatprep.subr.bf16.mxu0 0
        %1304 = vmatpush1.bf16.msra.mxu0 %v1289
        %1305 = vmatprep.subr.bf16.mxu0 0
        %1306 = vmatpush1.bf16.msra.mxu0 0
        %1307 = vmatprep.subr.bf16.mxu0 0
        %1308 = vmatpush1.bf16.msra.mxu0 0
        %1309 = vmatprep.subr.bf16.mxu0 0
        %1310 = vmatpush1.bf16.msra.mxu0 0
        %1311 = vmatprep.subr.bf16.mxu0 0
        %1312 = vmatpush1.bf16.msra.mxu0 0
        %1313 = vmatprep.subr.bf16.mxu0 0
        %1314 = vmatpush1.bf16.msra.mxu0 0
        %1315 = vmatprep.subr.bf16.mxu0 0
        %1316 = vmatpush1.bf16.msra.mxu0 0
        %1317 = vmatprep.subr.bf16.mxu0 0
        %1318 = vmatpush1.bf16.msra.mxu0 0
        %1319 = vmatprep.subr.bf16.mxu0 0
        %1320 = vmatpush1.bf16.msra.mxu0 0
        %1321 = vmatprep.subr.bf16.mxu0 0
        %1322 = vmatpush1.bf16.msra.mxu0 0
        %1323 = vmatprep.subr.bf16.mxu0 0
        %1324 = vmatpush1.bf16.msra.mxu0 0
        %1325 = vmatprep.subr.bf16.mxu0 0
        %1326 = vmatpush1.bf16.msra.mxu0 0
        %1327 = vmatprep.subr.bf16.mxu0 0
        %1328 = vmatpush1.bf16.msra.mxu0 0
        %1329 = vmatprep.mubr.bf16.mxu0 0
        %1330 = vmatmul.mubr.bf16.gmra.mrb[0].mxu0 %v1295
        %v1331 = vpop.f32.mrb[0].mxu0
        %v1332 = vadd.f32 0.0, %v1331
        %v1333 = vpop.f32.mrb[0].mxu0
        %v1334 = vpop.f32.mrb[0].mxu0
        %v1335 = vpop.f32.mrb[0].mxu0
        %1336 = vdwg.mxu0
        %v1337 = vadd.f32 %v1261, %v1332
        %v1338 = vmul.f32 %v1337, 0.5
        %v1339 = vtanh.pop %v1338
        %v1340 = vadd.f32 %v1339, 1.0
        %v1341 = vmul.f32 %v1340, 0.5
        %v1342 = vtanh.pop %v1337
        %1344 = vrot.lane.b32.xlu0 %v533, 32
        %v1345 = vpop.permute.xlu0 %1344
        %v1347 = vmul.f32 %v1341, %v1345
        %1349 = vrot.lane.b32.xlu0 %v1342, 64
        %v1350 = vpop.permute.xlu0 %1349
        %v1352 = vmul.f32 %v1341, %v1350
        %1354 = vrot.lane.b32.xlu0 %v1352, 32
        %v1355 = vpop.permute.xlu0 %1354
        %v1357 = vadd.f32 %v1347, %v1355
        %v1358 = vtanh.pop %v1357
        %1360 = vrot.lane.b32.xlu0 %v1358, 64
        %v1361 = vpop.permute.xlu0 %1360
        %v1363 = vmul.f32 %v1341, %v1361
        %v1364 = vpack.c.bf16 %v1363, %v1363
        %v1365 = vld [vmem:[%s9] sm:$0xf]
        %v1366 = vld [vmem:[%s9 + $0x4] sm:$0xf]
        %v1367 = vld [vmem:[%s9 + $0x8] sm:$0xf]
        %v1368 = vld [vmem:[%s9 + $0xc] sm:$0xf]
        %v1369 = vld [vmem:[%s10] sm:$0x1]
        %v1371 = vlaneseq
        %v1372 = vshrl.u32 %v1371, 7
        %v1373 = vsub.s32 0, %v1372
        %v1374 = vrot.slane %v1369, %v1373
        %1377 = vrot.lane.b32.xlu0 %v1364, 32
        %v1378 = vpop.permute.xlu0 %1377
        %v1383 = vunpack.c.l.b16 %v1365
        %v1384 = vunpack.c.l.b16 %v1366
        %v1385 = vunpack.c.l.b16 %v1367
        %v1386 = vunpack.c.l.b16 %v1368
        %v1387 = vpack.c.b16 %v1384, %v1383
        %v1388 = vpack.c.b16 %v1386, %v1385
        %v1392 = vsel %vm571, %v1378, 0
        %1394 = vmatprep.subr.bf16.mxu0 0
        %1395 = vmatpush1.bf16.msra.mxu0 %v1387
        %1396 = vmatprep.subr.bf16.mxu0 0
        %1397 = vmatpush1.bf16.msra.mxu0 %v1388
        %1398 = vmatprep.subr.bf16.mxu0 0
        %1399 = vmatpush1.bf16.msra.mxu0 0
        %1400 = vmatprep.subr.bf16.mxu0 0
        %1401 = vmatpush1.bf16.msra.mxu0 0
        %1402 = vmatprep.subr.bf16.mxu0 0
        %1403 = vmatpush1.bf16.msra.mxu0 0
        %1404 = vmatprep.subr.bf16.mxu0 0
        %1405 = vmatpush1.bf16.msra.mxu0 0
        %1406 = vmatprep.subr.bf16.mxu0 0
        %1407 = vmatpush1.bf16.msra.mxu0 0
        %1408 = vmatprep.subr.bf16.mxu0 0
        %1409 = vmatpush1.bf16.msra.mxu0 0
        %1410 = vmatprep.subr.bf16.mxu0 0
        %1411 = vmatpush1.bf16.msra.mxu0 0
        %1412 = vmatprep.subr.bf16.mxu0 0
        %1413 = vmatpush1.bf16.msra.mxu0 0
        %1414 = vmatprep.subr.bf16.mxu0 0
        %1415 = vmatpush1.bf16.msra.mxu0 0
        %1416 = vmatprep.subr.bf16.mxu0 0
        %1417 = vmatpush1.bf16.msra.mxu0 0
        %1418 = vmatprep.subr.bf16.mxu0 0
        %1419 = vmatpush1.bf16.msra.mxu0 0
        %1420 = vmatprep.subr.bf16.mxu0 0
        %1421 = vmatpush1.bf16.msra.mxu0 0
        %1422 = vmatprep.subr.bf16.mxu0 0
        %1423 = vmatpush1.bf16.msra.mxu0 0
        %1424 = vmatprep.subr.bf16.mxu0 0
        %1425 = vmatpush1.bf16.msra.mxu0 0
        %1426 = vmatprep.mubr.bf16.mxu0 0
        %1427 = vmatmul.mubr.bf16.gmra.mrb[0].mxu0 %v1392
        %v1428 = vpop.f32.mrb[0].mxu0
        %v1429 = vadd.f32 %v1374, %v1428
        %v1430 = vpop.f32.mrb[0].mxu0
        %v1431 = vpop.f32.mrb[0].mxu0
        %v1432 = vpop.f32.mrb[0].mxu0
        %1433 = vdwg.mxu0
        %vm1434 = vcmask 130048
        %v1435 = vsel %vm1434, %v1429, 0.0
        %1437 = vrot.lane.b32.xlu0 %v1363, 32
        %v1438 = vpop.permute.xlu0 %1437
        %v1440 = vsel %vm571, %v1438, 0.0
        %1442 = vrot.lane.b32.xlu0 %v1357, 96
        %v1443 = vpop.permute.xlu0 %1442
        %v1445 = vsel %vm571, %v1443, 0.0
        %v1446 = vlaneseq
        %v1447 = vshrl.u32 %v1446, 7
        %v1448 = vsub.s32 %v869, %v1447
        %v1449 = vrot.slane %v1122, %v1448
        %v1450 = vlaneseq
        %v1451 = vshrl.u32 %v1450, 7
        %v1452 = vsub.s32 %v869, %v1451
        %v1453 = vrot.slane %v1127, %v1452
        %v1454 = vlaneseq
        %v1455 = vshrl.u32 %v1454, 7
        %v1456 = vsub.s32 %v869, %v1455
        %v1457 = vrot.slane %v1132, %v1456
        %v1458 = vlaneseq
        %v1459 = vshrl.u32 %v1458, 7
        %v1460 = vsub.s32 %v869, %v1459
        %v1461 = vrot.slane %v1137, %v1460
        %v1462 = vlaneseq
        %v1463 = vshrl.u32 %v1462, 7
        %v1464 = vsub.s32 %v869, %v1463
        %v1465 = vrot.slane %v1142, %v1464
        %v1466 = vlaneseq
        %v1467 = vshrl.u32 %v1466, 7
        %v1468 = vsub.s32 %v869, %v1467
        %v1469 = vrot.slane %v1147, %v1468
        %v1470 = vlaneseq
        %v1471 = vshrl.u32 %v1470, 7
        %v1472 = vsub.s32 %v869, %v1471
        %v1473 = vrot.slane %v1152, %v1472
        %v1474 = vlaneseq
        %v1475 = vshrl.u32 %v1474, 7
        %v1476 = vsub.s32 %v869, %v1475
        %v1477 = vrot.slane %v1157, %v1476
        %v1478 = vsel %vm902, %v1453, %v1449
        %v1479 = vsel %vm904, %v1457, %v1478
        %v1480 = vsel %vm906, %v1461, %v1479
        %v1481 = vsel %vm908, %v1465, %v1480
        %v1482 = vsel %vm910, %v1469, %v1481
        %v1483 = vsel %vm912, %v1473, %v1482
        %v1484 = vsel %vm914, %v1477, %v1483
        %v1486 = vsel %vm917, %v1484, 0.0
        %1487 = vst [vmem:[%s517] sm:$0xff] %v1435
        %1488 = vst [vmem:[%s517 + $0x8] sm:$0xff] %v1440
        %1489 = vst [vmem:[%s517 + $0x10] sm:$0xff] %v1445
        %1490 = vst [vmem:[%s517 + $0x18] sm:$0xff] %v1486
        %s1491 = sand.u32 %s291, 1
        %s1492 = scalar_lea.sflag [#allocation4], %s1491
        %s1493 = sand.u32 %s291, 1
        %s1494 = smul.addr %s1493, 32
        %s1495 = scalar_lea.vmem [#allocation11], %s1494
        // Predicated region
        $region85: #{tpu_custom_call.1} parent=63 // pred_check
          %p1496 = pneg %p301
        $region86: #{tpu_custom_call.1} parent=63 // pred_check_branch
          %1498 = sbr.rel (%p1496) target = $region88
        $region87: #{tpu_custom_call.1} parent=63 // pred_region
          %s1500 = ssub.s32 512, 512
          %1501 = vsyncadd %s1492, %s1500
          %s1502 = smul.addr %s32, 4
          %s1503 = smul.addr %s1502, 128
          %s1504 = scalar_lea.hbm %s11, %s1503
          %s1506 = sshll.u32 %s1495, 4
          %s1507 = int_to_ptr.vmem [resolvable:$true] %s1506
          %1509 = dma.vmem_to_hbm [thread:$0]  %s1507, 512, %s1504, %s1492
        $region88: #{tpu_custom_call.1} parent=63 // pred_fallthru
          _
      $region64: #{tpu_custom_call.1} parent=5 // pred_fallthru
        _
      %p1510 = scmp.le.s32.totalorder 2, %s27
      // Predicated region
      $region89: #{tpu_custom_call.1} parent=5 // pred_check
        %p1511 = pneg %p1510
      $region90: #{tpu_custom_call.1} parent=5 // pred_check_branch
        %1513 = sbr.rel (%p1511) target = $region92
      $region91: #{tpu_custom_call.1} parent=5 // pred_region
        %s1514 = ssub.s32 %s27, 2
        // Predicated region
        $region93: #{tpu_custom_call.1} parent=91 // pred_check
          %p1515 = pneg %p307
        $region94: #{tpu_custom_call.1} parent=91 // pred_check_branch
          %1517 = sbr.rel (%p1515) target = $region96
        $region95: #{tpu_custom_call.1} parent=91 // pred_region
          %s1518 = sand.u32 %s292, 1
          %s1519 = scalar_lea.sflag [#allocation4], %s1518
          %s1520 = sand.u32 %s292, 1
          %s1521 = smul.addr %s1520, 32
          %s1522 = scalar_lea.vmem [#allocation11], %s1521
          %1523 = dma.done %s1519, 512
        $region96: #{tpu_custom_call.1} parent=91 // pred_fallthru
          _
      $region92: #{tpu_custom_call.1} parent=5 // pred_fallthru
        _
    $region6: #{tpu_custom_call.1} parent=1 // loop_footer
      %s31 = sadd.s32 1, %s27
    $region7: #{tpu_custom_call.1} parent=1 // loop_footer_branch
      %26 = sbr.rel target = $region3
    $region8: #{tpu_custom_call.1} parent=1 // loop_exit
      _
    %1524 = vsyncpa [#allocation3], 1
    %s1525 = scalar_lea.sflag [#allocation3], 1
    %1526 = vsyncpa %s1525, 1
    %1527 = vsyncpa [#allocation6], 1
    %s1528 = scalar_lea.sflag [#allocation6], 1
    %1529 = vsyncpa %s1528, 1
    %1530 = vsyncpa [#allocation9], 1
    %1531 = vsyncpa [#allocation4], 1
    %s1532 = scalar_lea.sflag [#allocation4], 1
    %1533 = vsyncpa %s1532, 1

</llo_original>
